<compile_context>
chip_gen: v5e
topology: v5e:2x2
jax: 0.10.0
libtpu: 0.0.40
codegen_flags: <defaults>
</compile_context>

<pallas_src>
import jax
import jax.numpy as jnp
from jax.experimental import pallas as pl
from jax.experimental.pallas import tpu as pltpu

LN_EPS = 1e-5

D_IN = 104        # 100 (embedding) + 4 (pair feats), streamed concatenated
D_ENC = 256       # lanes 0:128 -> enc_node block, 128:256 -> enc_rel block
D_HID = 256       # fc1 / fc2 hidden (true 200, zero-padded)
D_OUT = 2


def _layernorm(x, gamma, beta, d_true):
    # Sum-based LayerNorm dividing by the TRUE feature count, so zero-padded
    # lanes contribute nothing and (with gamma/beta zero-padded) stay zero.
    s = jnp.sum(x, axis=-1, keepdims=True)
    sq = jnp.sum(x * x, axis=-1, keepdims=True)
    mean = s / d_true
    var = jnp.maximum(sq / d_true - mean * mean, 0.0)
    inv = jax.lax.rsqrt(var + LN_EPS)
    return (x - mean) * inv * gamma + beta


def pairmlp_kernel(x_ref, w_enc_ref, w1a_ref, w1b_ref, w2_ref, w3_ref,
                   vec_ref, out_ref):
    x = x_ref[...]                       # [tb, 104]
    vec = vec_ref[...]                   # [8, 256] packed bias / gamma / beta

    b_enc = vec[0:1, :]                  # enc biases (node @ 0:100, rel @ 128:148)
    g_emb, g_rel = vec[1:2, 0:128], vec[1:2, 128:256]
    be_emb, be_rel = vec[2:3, 0:128], vec[2:3, 128:256]
    b1 = vec[3:4, :]
    g_fc2, be_fc2 = vec[4:5, :], vec[5:6, :]
    b2 = vec[6:7, :]
    b3 = vec[7:8, 0:D_OUT]

    # Fused block-diagonal encoder: enc_node -> lanes 0:128, enc_rel -> 128:256.
    h = jnp.dot(x, w_enc_ref[...], preferred_element_type=jnp.float32) + b_enc
    h_emb = _layernorm(h[:, :128], g_emb, be_emb, 100.0)   # LayerNorm(100)
    h_rel = _layernorm(h[:, 128:], g_rel, be_rel, 20.0)    # LayerNorm(20)

    # fc1 (split weights, no lane concat) -> relu -> LayerNorm(200)
    h2 = (jnp.dot(h_emb, w1a_ref[...], preferred_element_type=jnp.float32)
          + jnp.dot(h_rel, w1b_ref[...], preferred_element_type=jnp.float32)
          + b1)
    h2 = jnp.maximum(h2, 0.0)
    h2 = _layernorm(h2, g_fc2, be_fc2, 200.0)

    # fc2 + residual -> relu   (padded lanes remain exactly zero)
    h3 = jnp.dot(h2, w2_ref[...], preferred_element_type=jnp.float32) + b2 + h2
    h3 = jnp.maximum(h3, 0.0)

    # fc3 -> natural [tb, 2] output (no padded writeback)
    y = jnp.dot(h3, w3_ref[...], preferred_element_type=jnp.float32) + b3
    out_ref[...] = y.astype(out_ref.dtype)


def prepare_params(p):
    """One-time weight preprocessing (transpose, pad, pack). Call once and
    reuse the result across forward passes."""
    f32 = lambda a: jnp.asarray(a, jnp.float32)

    # Block-diagonal encoder weight [104, 256]:
    #   rows 0:100  -> cols 0:100    (enc_node.weight.T)
    #   rows 100:104 -> cols 128:148 (enc_rel.weight.T)
    w_enc = jnp.zeros((D_IN, D_ENC), jnp.float32)
    w_enc = w_enc.at[:100, :100].set(f32(p["enc_node_w"]).T)
    w_enc = w_enc.at[100:, 128:148].set(f32(p["enc_rel_w"]).T)

    # fc1 split along input (emb / rel), each padded to [128, 256].
    w1_t = f32(p["fc1_w"]).T                              # [120, 200]
    w1a = jnp.zeros((128, D_HID), jnp.float32).at[:100, :200].set(w1_t[:100])
    w1b = jnp.zeros((128, D_HID), jnp.float32).at[:20, :200].set(w1_t[100:])

    w2 = jnp.zeros((D_HID, D_HID), jnp.float32).at[:200, :200].set(f32(p["fc2_w"]).T)
    w3 = jnp.zeros((D_HID, D_OUT), jnp.float32).at[:200, :].set(f32(p["fc3_w"]).T)

    # Pack all small vectors (biases, LN gamma/beta) into one [8, 256] array.
    vec = jnp.zeros((8, D_ENC), jnp.float32)
    vec = vec.at[0, :100].set(f32(p["enc_node_b"]))
    vec = vec.at[0, 128:148].set(f32(p["enc_rel_b"]))
    vec = vec.at[1, :100].set(f32(p["ln_h_emb_g"]))
    vec = vec.at[1, 128:148].set(f32(p["ln_h_rel_g"]))
    vec = vec.at[2, :100].set(f32(p["ln_h_emb_b"]))
    vec = vec.at[2, 128:148].set(f32(p["ln_h_rel_b"]))
    vec = vec.at[3, :200].set(f32(p["fc1_b"]))
    vec = vec.at[4, :200].set(f32(p["ln_fc2_g"]))
    vec = vec.at[5, :200].set(f32(p["ln_fc2_b"]))
    vec = vec.at[6, :200].set(f32(p["fc2_b"]))
    vec = vec.at[7, :D_OUT].set(f32(p["fc3_b"]))

    return {"w_enc": w_enc, "w1a": w1a, "w1b": w1b, "w2": w2, "w3": w3,
            "vec": vec}


def pairmlp_forward(embedding, pair_feats, prepared, *, tb=2048):
    """embedding: [N, 100] f32, pair_feats: [N, 4] f32 -> [N, 2] f32.
    `prepared` is the output of prepare_params()."""
    n = embedding.shape[0]
    x = jnp.concatenate(
        [jnp.asarray(embedding, jnp.float32),
         jnp.asarray(pair_feats, jnp.float32)], axis=-1)        # [N, 104]

    def rup(v, m):
        return ((v + m - 1) // m) * m

    # Batch tile: multiple of 8, no larger than the (8-rounded) batch; for
    # large batches keep >= 2 grid steps so the 'parallel' axis can shard
    # across both TensorCores on v7x.
    n8 = rup(n, 8)
    tb = max(8, min(rup(int(tb), 8), n8))
    half = rup((n8 + 1) // 2, 8)
    if half >= 1024:
        tb = min(tb, half)
    n_pad = rup(n, tb)
    if n_pad != n:
        x = jnp.pad(x, ((0, n_pad - n), (0, 0)))

    w_enc = prepared["w_enc"]
    w1a, w1b = prepared["w1a"], prepared["w1b"]
    w2, w3, vec = prepared["w2"], prepared["w3"], prepared["vec"]
    weight_args = (w_enc, w1a, w1b, w2, w3, vec)

    def full_spec(a):
        return pl.BlockSpec(a.shape, lambda i: (0, 0))

    in_specs = [pl.BlockSpec((tb, D_IN), lambda i: (i, 0))] + \
               [full_spec(a) for a in weight_args]
    out_spec = pl.BlockSpec((tb, D_OUT), lambda i: (i, 0))
    grid = (n_pad // tb,)

    # Advisory cost estimate for the XLA scheduler.
    flops = 2 * n_pad * (D_IN * D_ENC + 128 * D_HID + 128 * D_HID
                         + D_HID * D_HID + D_HID * D_OUT)
    param_bytes = 4 * int(sum(a.size for a in weight_args))
    bytes_accessed = 4 * n_pad * (D_IN + D_OUT) + param_bytes
    cost = pl.CostEstimate(flops=flops, transcendentals=3 * n_pad,
                           bytes_accessed=bytes_accessed)

    out = pl.pallas_call(
        pairmlp_kernel,
        out_shape=jax.ShapeDtypeStruct((n_pad, D_OUT), jnp.float32),
        grid_spec=pltpu.PrefetchScalarGridSpec(
            num_scalar_prefetch=0,
            grid=grid,
            in_specs=in_specs,
            out_specs=out_spec,
        ),
        compiler_params=pltpu.CompilerParams(
            dimension_semantics=("parallel",),
            vmem_limit_bytes=48 * 1024 * 1024,
        ),
        cost_estimate=cost,
    )(x, *weight_args)

    return out[:n]


def init_params(key):
    """Deterministic synthetic parameters matching PairMLP.__init__ shapes."""
    ks = jax.random.split(key, 10)

    def linear(k, out_f, in_f):
        kw, kb = jax.random.split(k)
        bound = 1.0 / jnp.sqrt(in_f)
        w = jax.random.uniform(kw, (out_f, in_f), jnp.float32, -bound, bound)
        b = jax.random.uniform(kb, (out_f,), jnp.float32, -bound, bound)
        return w, b

    p = {}
    p["enc_node_w"], p["enc_node_b"] = linear(ks[0], 100, 100)
    p["enc_rel_w"], p["enc_rel_b"] = linear(ks[1], 20, 4)
    p["fc1_w"], p["fc1_b"] = linear(ks[2], 200, 120)
    p["fc2_w"], p["fc2_b"] = linear(ks[3], 200, 200)
    p["fc3_w"], p["fc3_b"] = linear(ks[4], 2, 200)
    # LayerNorm affine params (PyTorch init: gamma=1, beta=0) — perturbed so
    # the test exercises the affine transform.
    p["ln_h_emb_g"] = 1.0 + 0.01 * jax.random.normal(ks[5], (100,), jnp.float32)
    p["ln_h_emb_b"] = 0.01 * jax.random.normal(ks[6], (100,), jnp.float32)
    p["ln_h_rel_g"] = 1.0 + 0.01 * jax.random.normal(ks[7], (20,), jnp.float32)
    p["ln_h_rel_b"] = jnp.zeros((20,), jnp.float32)
    p["ln_fc2_g"] = 1.0 + 0.01 * jax.random.normal(ks[8], (200,), jnp.float32)
    p["ln_fc2_b"] = 0.01 * jax.random.normal(ks[9], (200,), jnp.float32)
    return p


def reference_forward(embedding, pair_feats, p):
    """Pure-JAX reference mirroring the PyTorch forward exactly."""
    def ln(x, g, b):
        m = jnp.mean(x, axis=-1, keepdims=True)
        v = jnp.mean((x - m) ** 2, axis=-1, keepdims=True)
        return (x - m) / jnp.sqrt(v + LN_EPS) * g + b

    h_emb = embedding @ p["enc_node_w"].T + p["enc_node_b"]
    h_emb = ln(h_emb, p["ln_h_emb_g"], p["ln_h_emb_b"])
    h_rel = pair_feats @ p["enc_rel_w"].T + p["enc_rel_b"]
    h_rel = ln(h_rel, p["ln_h_rel_g"], p["ln_h_rel_b"])
    h1 = jnp.concatenate([h_emb, h_rel], axis=-1)
    h2 = jax.nn.relu(h1 @ p["fc1_w"].T + p["fc1_b"])
    h2 = ln(h2, p["ln_fc2_g"], p["ln_fc2_b"])
    h3 = jax.nn.relu(h2 @ p["fc2_w"].T + p["fc2_b"] + h2)
    return h3 @ p["fc3_w"].T + p["fc3_b"]


if __name__ == "__main__":
    key = jax.random.PRNGKey(0)
    kp, ke, kf = jax.random.split(key, 3)

    params = init_params(kp)
    prepared = prepare_params(params)   # one-time weight prep (hoisted)

    # Small example batch; wrapper handles tiling/padding for any N.
    batch = 64
    embedding = jax.random.normal(ke, (batch, 100), jnp.float32)
    pair_feats = jax.random.normal(kf, (batch, 4), jnp.float32)

    y = pairmlp_forward(embedding, pair_feats, prepared)
    y = jax.block_until_ready(y)

    y_ref = reference_forward(embedding, pair_feats, params)
    assert y.shape == (batch, 2)
    assert jnp.allclose(y, y_ref, atol=1e-4, rtol=1e-4), (
        f"max abs err {jnp.max(jnp.abs(y - y_ref))}"
    )

    # Also exercise a non-tile-multiple batch to check the padding path.
    batch2 = 37
    y2 = pairmlp_forward(embedding[:batch2], pair_feats[:batch2], prepared)
    y2 = jax.block_until_ready(y2)
    assert y2.shape == (batch2, 2)
    assert jnp.allclose(y2, y_ref[:batch2], atol=1e-4, rtol=1e-4)

    print("KERNEL_OK")
</pallas_src>

<mosaic_0001>
module attributes {stable_mosaic.version = 11 : i64} {
  func.func @pairmlp_kernel(%arg0: i32, %arg1: memref<64x104xf32, #tpu.memory_space<vmem>>, %arg2: memref<104x256xf32, #tpu.memory_space<vmem>>, %arg3: memref<128x256xf32, #tpu.memory_space<vmem>>, %arg4: memref<128x256xf32, #tpu.memory_space<vmem>>, %arg5: memref<256x256xf32, #tpu.memory_space<vmem>>, %arg6: memref<256x2xf32, #tpu.memory_space<vmem>>, %arg7: memref<8x256xf32, #tpu.memory_space<vmem>>, %arg8: memref<64x2xf32, #tpu.memory_space<vmem>>) attributes {dimension_semantics = [#tpu.dimension_semantics<parallel>], iteration_bounds = array<i64: 1>, scalar_prefetch = 0 : i64, scratch_operands = 0 : i64, tpu.core_type = #tpu.core_type<tc>, window_params = [{transform_indices = @transform_0, window_bounds = array<i64: 64, 104>}, {pipeline_mode = #tpu.pipeline_mode<synchronous>, transform_indices = @transform_1, window_bounds = array<i64: 104, 256>}, {pipeline_mode = #tpu.pipeline_mode<synchronous>, transform_indices = @transform_2, window_bounds = array<i64: 128, 256>}, {pipeline_mode = #tpu.pipeline_mode<synchronous>, transform_indices = @transform_3, window_bounds = array<i64: 128, 256>}, {pipeline_mode = #tpu.pipeline_mode<synchronous>, transform_indices = @transform_4, window_bounds = array<i64: 256, 256>}, {pipeline_mode = #tpu.pipeline_mode<synchronous>, transform_indices = @transform_5, window_bounds = array<i64: 256, 2>}, {pipeline_mode = #tpu.pipeline_mode<synchronous>, transform_indices = @transform_6, window_bounds = array<i64: 8, 256>}, {transform_indices = @transform_7, window_bounds = array<i64: 64, 2>}]} {
    %c0 = arith.constant 0 : index
    %c0_0 = arith.constant 0 : index
    %0 = vector.load %arg1[%c0, %c0_0] : memref<64x104xf32, #tpu.memory_space<vmem>>, vector<64x104xf32>
    %c0_1 = arith.constant 0 : index
    %c0_2 = arith.constant 0 : index
    %1 = vector.load %arg7[%c0_1, %c0_2] : memref<8x256xf32, #tpu.memory_space<vmem>>, vector<8x256xf32>
    %2 = vector.extract_strided_slice %1 {offsets = [0, 0], sizes = [1, 256], strides = [1, 1]} : vector<8x256xf32> to vector<1x256xf32>
    %3 = vector.extract_strided_slice %1 {offsets = [1, 0], sizes = [1, 128], strides = [1, 1]} : vector<8x256xf32> to vector<1x128xf32>
    %4 = vector.extract_strided_slice %1 {offsets = [1, 128], sizes = [1, 128], strides = [1, 1]} : vector<8x256xf32> to vector<1x128xf32>
    %5 = vector.extract_strided_slice %1 {offsets = [2, 0], sizes = [1, 128], strides = [1, 1]} : vector<8x256xf32> to vector<1x128xf32>
    %6 = vector.extract_strided_slice %1 {offsets = [2, 128], sizes = [1, 128], strides = [1, 1]} : vector<8x256xf32> to vector<1x128xf32>
    %7 = vector.extract_strided_slice %1 {offsets = [3, 0], sizes = [1, 256], strides = [1, 1]} : vector<8x256xf32> to vector<1x256xf32>
    %8 = vector.extract_strided_slice %1 {offsets = [4, 0], sizes = [1, 256], strides = [1, 1]} : vector<8x256xf32> to vector<1x256xf32>
    %9 = vector.extract_strided_slice %1 {offsets = [5, 0], sizes = [1, 256], strides = [1, 1]} : vector<8x256xf32> to vector<1x256xf32>
    %10 = vector.extract_strided_slice %1 {offsets = [6, 0], sizes = [1, 256], strides = [1, 1]} : vector<8x256xf32> to vector<1x256xf32>
    %11 = vector.extract_strided_slice %1 {offsets = [7, 0], sizes = [1, 2], strides = [1, 1]} : vector<8x256xf32> to vector<1x2xf32>
    %c0_3 = arith.constant 0 : index
    %c0_4 = arith.constant 0 : index
    %12 = vector.load %arg2[%c0_3, %c0_4] : memref<104x256xf32, #tpu.memory_space<vmem>>, vector<104x256xf32>
    %cst = arith.constant dense<0.000000e+00> : vector<64x256xf32>
    %13 = tpu.matmul %0, %12, %cst {dimension_numbers = #tpu.dot_dimension_numbers<[1], [0], [0], [1], [0, 0, 1, 1], [], []>} : vector<64x104xf32>, vector<104x256xf32>, vector<64x256xf32> -> vector<64x256xf32>
    %14 = vector.broadcast %2 : vector<1x256xf32> to vector<64x256xf32>
    %15 = arith.addf %13, %14 : vector<64x256xf32>
    %16 = vector.extract_strided_slice %15 {offsets = [0, 0], sizes = [64, 128], strides = [1, 1]} : vector<64x256xf32> to vector<64x128xf32>
    %cst_5 = arith.constant dense<0.000000e+00> : vector<64xf32>
    %17 = vector.multi_reduction <add>, %16, %cst_5 [1] : vector<64x128xf32> to vector<64xf32>
    %18 = vector.shape_cast %17 : vector<64xf32> to vector<64x1xf32>
    %19 = arith.mulf %16, %16 : vector<64x128xf32>
    %cst_6 = arith.constant dense<0.000000e+00> : vector<64xf32>
    %20 = vector.multi_reduction <add>, %19, %cst_6 [1] : vector<64x128xf32> to vector<64xf32>
    %21 = vector.shape_cast %20 : vector<64xf32> to vector<64x1xf32>
    %cst_7 = arith.constant 1.000000e+02 : f32
    %22 = vector.broadcast %cst_7 : f32 to vector<64x1xf32>
    %23 = arith.divf %18, %22 : vector<64x1xf32>
    %cst_8 = arith.constant 1.000000e+02 : f32
    %24 = vector.broadcast %cst_8 : f32 to vector<64x1xf32>
    %25 = arith.divf %21, %24 : vector<64x1xf32>
    %26 = arith.mulf %23, %23 : vector<64x1xf32>
    %27 = arith.subf %25, %26 : vector<64x1xf32>
    %cst_9 = arith.constant 0.000000e+00 : f32
    %28 = vector.broadcast %cst_9 : f32 to vector<64x1xf32>
    %29 = arith.maximumf %27, %28 : vector<64x1xf32>
    %cst_10 = arith.constant 9.99999974E-6 : f32
    %30 = vector.broadcast %cst_10 : f32 to vector<64x1xf32>
    %31 = arith.addf %29, %30 : vector<64x1xf32>
    %32 = math.rsqrt %31 : vector<64x1xf32>
    %33 = vector.broadcast %23 : vector<64x1xf32> to vector<64x128xf32>
    %34 = arith.subf %16, %33 : vector<64x128xf32>
    %35 = vector.broadcast %32 : vector<64x1xf32> to vector<64x128xf32>
    %36 = arith.mulf %34, %35 : vector<64x128xf32>
    %37 = vector.broadcast %3 : vector<1x128xf32> to vector<64x128xf32>
    %38 = arith.mulf %36, %37 : vector<64x128xf32>
    %39 = vector.broadcast %5 : vector<1x128xf32> to vector<64x128xf32>
    %40 = arith.addf %38, %39 : vector<64x128xf32>
    %41 = vector.extract_strided_slice %15 {offsets = [0, 128], sizes = [64, 128], strides = [1, 1]} : vector<64x256xf32> to vector<64x128xf32>
    %cst_11 = arith.constant dense<0.000000e+00> : vector<64xf32>
    %42 = vector.multi_reduction <add>, %41, %cst_11 [1] : vector<64x128xf32> to vector<64xf32>
    %43 = vector.shape_cast %42 : vector<64xf32> to vector<64x1xf32>
    %44 = arith.mulf %41, %41 : vector<64x128xf32>
    %cst_12 = arith.constant dense<0.000000e+00> : vector<64xf32>
    %45 = vector.multi_reduction <add>, %44, %cst_12 [1] : vector<64x128xf32> to vector<64xf32>
    %46 = vector.shape_cast %45 : vector<64xf32> to vector<64x1xf32>
    %cst_13 = arith.constant 2.000000e+01 : f32
    %47 = vector.broadcast %cst_13 : f32 to vector<64x1xf32>
    %48 = arith.divf %43, %47 : vector<64x1xf32>
    %cst_14 = arith.constant 2.000000e+01 : f32
    %49 = vector.broadcast %cst_14 : f32 to vector<64x1xf32>
    %50 = arith.divf %46, %49 : vector<64x1xf32>
    %51 = arith.mulf %48, %48 : vector<64x1xf32>
    %52 = arith.subf %50, %51 : vector<64x1xf32>
    %cst_15 = arith.constant 0.000000e+00 : f32
    %53 = vector.broadcast %cst_15 : f32 to vector<64x1xf32>
    %54 = arith.maximumf %52, %53 : vector<64x1xf32>
    %cst_16 = arith.constant 9.99999974E-6 : f32
    %55 = vector.broadcast %cst_16 : f32 to vector<64x1xf32>
    %56 = arith.addf %54, %55 : vector<64x1xf32>
    %57 = math.rsqrt %56 : vector<64x1xf32>
    %58 = vector.broadcast %48 : vector<64x1xf32> to vector<64x128xf32>
    %59 = arith.subf %41, %58 : vector<64x128xf32>
    %60 = vector.broadcast %57 : vector<64x1xf32> to vector<64x128xf32>
    %61 = arith.mulf %59, %60 : vector<64x128xf32>
    %62 = vector.broadcast %4 : vector<1x128xf32> to vector<64x128xf32>
    %63 = arith.mulf %61, %62 : vector<64x128xf32>
    %64 = vector.broadcast %6 : vector<1x128xf32> to vector<64x128xf32>
    %65 = arith.addf %63, %64 : vector<64x128xf32>
    %c0_17 = arith.constant 0 : index
    %c0_18 = arith.constant 0 : index
    %66 = vector.load %arg3[%c0_17, %c0_18] : memref<128x256xf32, #tpu.memory_space<vmem>>, vector<128x256xf32>
    %cst_19 = arith.constant dense<0.000000e+00> : vector<64x256xf32>
    %67 = tpu.matmul %40, %66, %cst_19 {dimension_numbers = #tpu.dot_dimension_numbers<[1], [0], [0], [1], [0, 0, 1, 1], [], []>} : vector<64x128xf32>, vector<128x256xf32>, vector<64x256xf32> -> vector<64x256xf32>
    %c0_20 = arith.constant 0 : index
    %c0_21 = arith.constant 0 : index
    %68 = vector.load %arg4[%c0_20, %c0_21] : memref<128x256xf32, #tpu.memory_space<vmem>>, vector<128x256xf32>
    %cst_22 = arith.constant dense<0.000000e+00> : vector<64x256xf32>
    %69 = tpu.matmul %65, %68, %cst_22 {dimension_numbers = #tpu.dot_dimension_numbers<[1], [0], [0], [1], [0, 0, 1, 1], [], []>} : vector<64x128xf32>, vector<128x256xf32>, vector<64x256xf32> -> vector<64x256xf32>
    %70 = arith.addf %67, %69 : vector<64x256xf32>
    %71 = vector.broadcast %7 : vector<1x256xf32> to vector<64x256xf32>
    %72 = arith.addf %70, %71 : vector<64x256xf32>
    %cst_23 = arith.constant 0.000000e+00 : f32
    %73 = vector.broadcast %cst_23 : f32 to vector<64x256xf32>
    %74 = arith.maximumf %72, %73 : vector<64x256xf32>
    %cst_24 = arith.constant dense<0.000000e+00> : vector<64xf32>
    %75 = vector.multi_reduction <add>, %74, %cst_24 [1] : vector<64x256xf32> to vector<64xf32>
    %76 = vector.shape_cast %75 : vector<64xf32> to vector<64x1xf32>
    %77 = arith.mulf %74, %74 : vector<64x256xf32>
    %cst_25 = arith.constant dense<0.000000e+00> : vector<64xf32>
    %78 = vector.multi_reduction <add>, %77, %cst_25 [1] : vector<64x256xf32> to vector<64xf32>
    %79 = vector.shape_cast %78 : vector<64xf32> to vector<64x1xf32>
    %cst_26 = arith.constant 2.000000e+02 : f32
    %80 = vector.broadcast %cst_26 : f32 to vector<64x1xf32>
    %81 = arith.divf %76, %80 : vector<64x1xf32>
    %cst_27 = arith.constant 2.000000e+02 : f32
    %82 = vector.broadcast %cst_27 : f32 to vector<64x1xf32>
    %83 = arith.divf %79, %82 : vector<64x1xf32>
    %84 = arith.mulf %81, %81 : vector<64x1xf32>
    %85 = arith.subf %83, %84 : vector<64x1xf32>
    %cst_28 = arith.constant 0.000000e+00 : f32
    %86 = vector.broadcast %cst_28 : f32 to vector<64x1xf32>
    %87 = arith.maximumf %85, %86 : vector<64x1xf32>
    %cst_29 = arith.constant 9.99999974E-6 : f32
    %88 = vector.broadcast %cst_29 : f32 to vector<64x1xf32>
    %89 = arith.addf %87, %88 : vector<64x1xf32>
    %90 = math.rsqrt %89 : vector<64x1xf32>
    %91 = vector.broadcast %81 : vector<64x1xf32> to vector<64x256xf32>
    %92 = arith.subf %74, %91 : vector<64x256xf32>
    %93 = vector.broadcast %90 : vector<64x1xf32> to vector<64x256xf32>
    %94 = arith.mulf %92, %93 : vector<64x256xf32>
    %95 = vector.broadcast %8 : vector<1x256xf32> to vector<64x256xf32>
    %96 = arith.mulf %94, %95 : vector<64x256xf32>
    %97 = vector.broadcast %9 : vector<1x256xf32> to vector<64x256xf32>
    %98 = arith.addf %96, %97 : vector<64x256xf32>
    %c0_30 = arith.constant 0 : index
    %c0_31 = arith.constant 0 : index
    %99 = vector.load %arg5[%c0_30, %c0_31] : memref<256x256xf32, #tpu.memory_space<vmem>>, vector<256x256xf32>
    %cst_32 = arith.constant dense<0.000000e+00> : vector<64x256xf32>
    %100 = tpu.matmul %98, %99, %cst_32 {dimension_numbers = #tpu.dot_dimension_numbers<[1], [0], [0], [1], [0, 0, 1, 1], [], []>} : vector<64x256xf32>, vector<256x256xf32>, vector<64x256xf32> -> vector<64x256xf32>
    %101 = vector.broadcast %10 : vector<1x256xf32> to vector<64x256xf32>
    %102 = arith.addf %100, %101 : vector<64x256xf32>
    %103 = arith.addf %102, %98 : vector<64x256xf32>
    %cst_33 = arith.constant 0.000000e+00 : f32
    %104 = vector.broadcast %cst_33 : f32 to vector<64x256xf32>
    %105 = arith.maximumf %103, %104 : vector<64x256xf32>
    %c0_34 = arith.constant 0 : index
    %c0_35 = arith.constant 0 : index
    %106 = vector.load %arg6[%c0_34, %c0_35] : memref<256x2xf32, #tpu.memory_space<vmem>>, vector<256x2xf32>
    %cst_36 = arith.constant dense<0.000000e+00> : vector<64x2xf32>
    %107 = tpu.matmul %105, %106, %cst_36 {dimension_numbers = #tpu.dot_dimension_numbers<[1], [0], [0], [1], [0, 0, 1, 1], [], []>} : vector<64x256xf32>, vector<256x2xf32>, vector<64x2xf32> -> vector<64x2xf32>
    %108 = vector.broadcast %11 : vector<1x2xf32> to vector<64x2xf32>
    %109 = arith.addf %107, %108 : vector<64x2xf32>
    %c0_37 = arith.constant 0 : index
    %c0_38 = arith.constant 0 : index
    %110 = vector.load %arg8[%c0_37, %c0_38] : memref<64x2xf32, #tpu.memory_space<vmem>>, vector<64x2xf32>
    tpu.vector_store %arg8[%c0_37, %c0_38], %109 {strides = array<i32>} : memref<64x2xf32, #tpu.memory_space<vmem>>, vector<64x2xf32>,
    return
  }
  func.func @transform_0(%arg0: i32) -> (i32, i32) {
    %c0_i32 = arith.constant 0 : i32
    %c0_i32_0 = arith.constant 0 : i32
    return %arg0, %c0_i32 : i32, i32
  }
  func.func @transform_1(%arg0: i32) -> (i32, i32) {
    %c0_i32 = arith.constant 0 : i32
    %c0_i32_0 = arith.constant 0 : i32
    %c0_i32_1 = arith.constant 0 : i32
    return %c0_i32, %c0_i32_0 : i32, i32
  }
  func.func @transform_2(%arg0: i32) -> (i32, i32) {
    %c0_i32 = arith.constant 0 : i32
    %c0_i32_0 = arith.constant 0 : i32
    %c0_i32_1 = arith.constant 0 : i32
    return %c0_i32, %c0_i32_0 : i32, i32
  }
  func.func @transform_3(%arg0: i32) -> (i32, i32) {
    %c0_i32 = arith.constant 0 : i32
    %c0_i32_0 = arith.constant 0 : i32
    %c0_i32_1 = arith.constant 0 : i32
    return %c0_i32, %c0_i32_0 : i32, i32
  }
  func.func @transform_4(%arg0: i32) -> (i32, i32) {
    %c0_i32 = arith.constant 0 : i32
    %c0_i32_0 = arith.constant 0 : i32
    %c0_i32_1 = arith.constant 0 : i32
    return %c0_i32, %c0_i32_0 : i32, i32
  }
  func.func @transform_5(%arg0: i32) -> (i32, i32) {
    %c0_i32 = arith.constant 0 : i32
    %c0_i32_0 = arith.constant 0 : i32
    %c0_i32_1 = arith.constant 0 : i32
    return %c0_i32, %c0_i32_0 : i32, i32
  }
  func.func @transform_6(%arg0: i32) -> (i32, i32) {
    %c0_i32 = arith.constant 0 : i32
    %c0_i32_0 = arith.constant 0 : i32
    %c0_i32_1 = arith.constant 0 : i32
    return %c0_i32, %c0_i32_0 : i32, i32
  }
  func.func @transform_7(%arg0: i32) -> (i32, i32) {
    %c0_i32 = arith.constant 0 : i32
    %c0_i32_0 = arith.constant 0 : i32
    return %arg0, %c0_i32 : i32, i32
  }
}

</mosaic_0001>

<llo_original>
// kernel: tpu_custom_call.1
$region0: #{tpu_custom_call.1}
  #allocation0 [shape = 'u32[]', space=smem, size = 0x4, offset = 0x4, fixed_abs, tag = 'smem constant byte address 0x4 - core index']
  #allocation1 [shape = 'u32[72,128]{1,0:T(1,128)}', space=vmem, size = 0x9000, scoped, tag = 'internal scratch']
  %s0 = inlined_call_operand.hbm [shape: f32[64,104], index: 0, kind: input, shape index: {}]
  %s1 = inlined_call_operand.hbm [shape: f32[104,256], index: 1, kind: input, shape index: {}]
  %s2 = inlined_call_operand.vmem [shape: f32[128,256], index: 2, kind: input, shape index: {}]
  %s3 = inlined_call_operand.hbm [shape: f32[128,256], index: 3, kind: input, shape index: {}]
  %s4 = inlined_call_operand.hbm [shape: f32[256,256], index: 4, kind: input, shape index: {}]
  %s5 = inlined_call_operand.vmem [shape: f32[256,2], index: 5, kind: input, shape index: {}]
  %s6 = inlined_call_operand.hbm [shape: f32[8,256], index: 6, kind: input, shape index: {}]
  %s7 = inlined_call_operand.vmem [shape: f32[64,2], index: 7, kind: output, shape index: {}]
  %s8 = sld [smem:[#allocation0]]
  $region58: #{tpu_custom_call.1} parent=0
    _
  %s10 = ssub.s32 1, %s8
  %s11 = scalar_select 0, %s10, %s8
  $region1: #{tpu_custom_call.1} parent=0
    #allocation2 [shape = 'u8[32768]{0}', space=vmem, size = 0x8000, scoped, tag = 'input window, operand 0, single buffered']
    #allocation3 [shape = 's32[1]{0}', space=sflag, size = 0x4, scoped, tag = 'scoped memory for tpu_custom_call.1']
    #allocation4 [shape = 'u8[106496]{0}', space=vmem, size = 0x1a000, scoped, tag = 'input window, operand 1, single buffered']
    #allocation5 [shape = 's32[1]{0}', space=sflag, size = 0x4, scoped, tag = 'scoped memory for tpu_custom_call.1']
    #allocation6 [shape = 'u8[131072]{0}', space=vmem, size = 0x20000, scoped, tag = 'input window, operand 3, single buffered']
    #allocation7 [shape = 'u8[262144]{0}', space=vmem, size = 0x40000, scoped, tag = 'input window, operand 4, single buffered']
    #allocation8 [shape = 's32[1]{0}', space=sflag, size = 0x4, scoped, tag = 'scoped memory for tpu_custom_call.1']
    #allocation9 [shape = 'u8[8192]{0}', space=vmem, size = 0x2000, scoped, tag = 'input window, operand 6, single buffered']
    %12 = vsyncpa [#allocation3], 0
    %13 = vsyncpa [#allocation5], 0
    %14 = vsyncpa [#allocation8], 0
    // Predicated region
    $region2: #{tpu_custom_call.1} parent=1 // pred_check
      _
    $region3: #{tpu_custom_call.1} parent=1 // pred_check_branch
      %16 = sbr.rel (0) target = $region5
    $region4: #{tpu_custom_call.1} parent=1 // pred_region
      %18 = vsyncadd [#allocation3], 0
      %s19 = sshll.u32 %s0, 4
      %s20 = int_to_ptr.hbm [resolvable:$true] %s19
      %s21 = sshll.u32 [#allocation2], 4
      %s22 = int_to_ptr.vmem [resolvable:$true] %s21
      %27 = dma.hbm_to_vmem [thread:$0]  %s20, 1024, %s22, [#allocation3], 128, 128, 8
    $region5: #{tpu_custom_call.1} parent=1 // pred_fallthru
      _
    // Predicated region
    $region6: #{tpu_custom_call.1} parent=1 // pred_check
      _
    $region7: #{tpu_custom_call.1} parent=1 // pred_check_branch
      %29 = sbr.rel (0) target = $region9
    $region8: #{tpu_custom_call.1} parent=1 // pred_region
      %31 = vsyncadd [#allocation5], 0
      %s32 = sshll.u32 %s1, 4
      %s33 = int_to_ptr.hbm [resolvable:$true] %s32
      %s34 = sshll.u32 [#allocation4], 4
      %s35 = int_to_ptr.vmem [resolvable:$true] %s34
      %40 = dma.hbm_to_vmem [thread:$0]  %s33, 3328, %s35, [#allocation5], 256, 256, 16
    $region9: #{tpu_custom_call.1} parent=1 // pred_fallthru
      _
    // Predicated region
    $region10: #{tpu_custom_call.1} parent=1 // pred_check
      _
    $region11: #{tpu_custom_call.1} parent=1 // pred_check_branch
      %42 = sbr.rel (0) target = $region13
    $region12: #{tpu_custom_call.1} parent=1 // pred_region
      _
    $region13: #{tpu_custom_call.1} parent=1 // pred_fallthru
      _
    // Predicated region
    $region14: #{tpu_custom_call.1} parent=1 // pred_check
      _
    $region15: #{tpu_custom_call.1} parent=1 // pred_check_branch
      %44 = sbr.rel (0) target = $region17
    $region16: #{tpu_custom_call.1} parent=1 // pred_region
      %46 = vsyncadd [#allocation5], 0
      %s47 = sshll.u32 %s3, 4
      %s48 = int_to_ptr.hbm [resolvable:$true] %s47
      %s49 = sshll.u32 [#allocation6], 4
      %s50 = int_to_ptr.vmem [resolvable:$true] %s49
      %55 = dma.hbm_to_vmem [thread:$0]  %s48, 4096, %s50, [#allocation5], 256, 256, 16
    $region17: #{tpu_custom_call.1} parent=1 // pred_fallthru
      _
    // Predicated region
    $region18: #{tpu_custom_call.1} parent=1 // pred_check
      _
    $region19: #{tpu_custom_call.1} parent=1 // pred_check_branch
      %57 = sbr.rel (0) target = $region21
    $region20: #{tpu_custom_call.1} parent=1 // pred_region
      %59 = vsyncadd [#allocation8], 0
      %s60 = sshll.u32 %s4, 4
      %s61 = int_to_ptr.hbm [resolvable:$true] %s60
      %s62 = sshll.u32 [#allocation7], 4
      %s63 = int_to_ptr.vmem [resolvable:$true] %s62
      %68 = dma.hbm_to_vmem [thread:$0]  %s61, 8192, %s63, [#allocation8], 256, 256, 16
    $region21: #{tpu_custom_call.1} parent=1 // pred_fallthru
      _
    // Predicated region
    $region22: #{tpu_custom_call.1} parent=1 // pred_check
      _
    $region23: #{tpu_custom_call.1} parent=1 // pred_check_branch
      %70 = sbr.rel (0) target = $region25
    $region24: #{tpu_custom_call.1} parent=1 // pred_region
      _
    $region25: #{tpu_custom_call.1} parent=1 // pred_fallthru
      _
    // Predicated region
    $region26: #{tpu_custom_call.1} parent=1 // pred_check
      _
    $region27: #{tpu_custom_call.1} parent=1 // pred_check_branch
      %72 = sbr.rel (0) target = $region29
    $region28: #{tpu_custom_call.1} parent=1 // pred_region
      %74 = vsyncadd [#allocation8], 0
      %s76 = sshll.u32 %s6, 4
      %s77 = int_to_ptr.hbm [resolvable:$true] %s76
      %s78 = sshll.u32 [#allocation9], 4
      %s79 = int_to_ptr.vmem [resolvable:$true] %s78
      %81 = dma.hbm_to_vmem [thread:$0]  %s77, 256, %s79, [#allocation8]
    $region29: #{tpu_custom_call.1} parent=1 // pred_fallthru
      _
    // Predicated region
    $region30: #{tpu_custom_call.1} parent=1 // pred_check
      _
    $region31: #{tpu_custom_call.1} parent=1 // pred_check_branch
      %83 = sbr.rel (0) target = $region33
    $region32: #{tpu_custom_call.1} parent=1 // pred_region
      %85 = dma.done [#allocation3], 1024
    $region33: #{tpu_custom_call.1} parent=1 // pred_fallthru
      _
    // Predicated region
    $region34: #{tpu_custom_call.1} parent=1 // pred_check
      _
    $region35: #{tpu_custom_call.1} parent=1 // pred_check_branch
      %87 = sbr.rel (0) target = $region37
    $region36: #{tpu_custom_call.1} parent=1 // pred_region
      %89 = dma.done [#allocation5], 3328
    $region37: #{tpu_custom_call.1} parent=1 // pred_fallthru
      _
    // Predicated region
    $region38: #{tpu_custom_call.1} parent=1 // pred_check
      _
    $region39: #{tpu_custom_call.1} parent=1 // pred_check_branch
      %91 = sbr.rel (0) target = $region41
    $region40: #{tpu_custom_call.1} parent=1 // pred_region
      %93 = dma.done [#allocation5], 4096
    $region41: #{tpu_custom_call.1} parent=1 // pred_fallthru
      _
    // Predicated region
    $region42: #{tpu_custom_call.1} parent=1 // pred_check
      _
    $region43: #{tpu_custom_call.1} parent=1 // pred_check_branch
      %95 = sbr.rel (0) target = $region45
    $region44: #{tpu_custom_call.1} parent=1 // pred_region
      %97 = dma.done [#allocation8], 8192
    $region45: #{tpu_custom_call.1} parent=1 // pred_fallthru
      _
    // Predicated region
    $region46: #{tpu_custom_call.1} parent=1 // pred_check
      _
    $region47: #{tpu_custom_call.1} parent=1 // pred_check_branch
      %99 = sbr.rel (0) target = $region49
    $region48: #{tpu_custom_call.1} parent=1 // pred_region
      %101 = dma.done [#allocation8], 256
    $region49: #{tpu_custom_call.1} parent=1 // pred_fallthru
      _
    %v102 = vld [vmem:[#allocation2] sm:$0xff]
    %v103 = vld [vmem:[#allocation2 + $0x8] sm:$0xff]
    %v104 = vld [vmem:[#allocation2 + $0x10] sm:$0xff]
    %v105 = vld [vmem:[#allocation2 + $0x18] sm:$0xff]
    %v106 = vld [vmem:[#allocation2 + $0x20] sm:$0xff]
    %v107 = vld [vmem:[#allocation2 + $0x28] sm:$0xff]
    %v108 = vld [vmem:[#allocation2 + $0x30] sm:$0xff]
    %v109 = vld [vmem:[#allocation2 + $0x38] sm:$0xff]
    %v110 = vld [vmem:[#allocation9] sm:$0xff]
    %v111 = vld [vmem:[#allocation9 + $0x8] sm:$0xff]
    %v112 = vld [vmem:[#allocation4] sm:$0xff]
    %v113 = vld [vmem:[#allocation4 + $0x8] sm:$0xff]
    %v114 = vld [vmem:[#allocation4 + $0x10] sm:$0xff]
    %v115 = vld [vmem:[#allocation4 + $0x18] sm:$0xff]
    %v116 = vld [vmem:[#allocation4 + $0x20] sm:$0xff]
    %v117 = vld [vmem:[#allocation4 + $0x28] sm:$0xff]
    %v118 = vld [vmem:[#allocation4 + $0x30] sm:$0xff]
    %v119 = vld [vmem:[#allocation4 + $0x38] sm:$0xff]
    %v120 = vld [vmem:[#allocation4 + $0x40] sm:$0xff]
    %v121 = vld [vmem:[#allocation4 + $0x48] sm:$0xff]
    %v122 = vld [vmem:[#allocation4 + $0x50] sm:$0xff]
    %v123 = vld [vmem:[#allocation4 + $0x58] sm:$0xff]
    %v124 = vld [vmem:[#allocation4 + $0x60] sm:$0xff]
    %v125 = vld [vmem:[#allocation4 + $0x68] sm:$0xff]
    %v126 = vld [vmem:[#allocation4 + $0x70] sm:$0xff]
    %v127 = vld [vmem:[#allocation4 + $0x78] sm:$0xff]
    %v128 = vld [vmem:[#allocation4 + $0x80] sm:$0xff]
    %v129 = vld [vmem:[#allocation4 + $0x88] sm:$0xff]
    %v130 = vld [vmem:[#allocation4 + $0x90] sm:$0xff]
    %v131 = vld [vmem:[#allocation4 + $0x98] sm:$0xff]
    %v132 = vld [vmem:[#allocation4 + $0xa0] sm:$0xff]
    %v133 = vld [vmem:[#allocation4 + $0xa8] sm:$0xff]
    %v134 = vld [vmem:[#allocation4 + $0xb0] sm:$0xff]
    %v135 = vld [vmem:[#allocation4 + $0xb8] sm:$0xff]
    %v136 = vld [vmem:[#allocation4 + $0xc0] sm:$0xff]
    %v137 = vld [vmem:[#allocation4 + $0xc8] sm:$0xff]
    %v138 = vperm.slane %v110, 0
    %v139 = vperm.slane %v111, 0
    %vm140 = vcmask 850944
    %v142 = vsel %vm140, %v102, 0
    %v145 = vsel %vm140, %v103, 0
    %v148 = vsel %vm140, %v104, 0
    %v151 = vsel %vm140, %v105, 0
    %v154 = vsel %vm140, %v106, 0
    %v157 = vsel %vm140, %v107, 0
    %v160 = vsel %vm140, %v108, 0
    %v163 = vsel %vm140, %v109, 0
    %165 = vmatpush.msra.mxu0 0.0
    %166 = vmatpush.msra.mxu0 0.0
    %167 = vmatpush.msra.mxu0 0.0
    %168 = vmatpush.msra.mxu0 %v136
    %169 = vmatpush.msra.mxu0 %v134
    %170 = vmatpush.msra.mxu0 %v132
    %171 = vmatpush.msra.mxu0 %v130
    %172 = vmatpush.msra.mxu0 %v128
    %173 = vmatpush.msra.mxu0 %v126
    %174 = vmatpush.msra.mxu0 %v124
    %175 = vmatpush.msra.mxu0 %v122
    %176 = vmatpush.msra.mxu0 %v120
    %177 = vmatpush.msra.mxu0 %v118
    %178 = vmatpush.msra.mxu0 %v116
    %179 = vmatpush.msra.mxu0 %v114
    %180 = vmatpush.msra.mxu0 %v112
    %181 = vmatmul.f32.gmra.mxu0 %v142
    %v182 = vpop.f32.mrf.mxu0
    %v183 = vadd.f32 %v138, %v182
    %184 = vmatmul.f32.gmra.mxu0 %v145
    %v185 = vpop.f32.mrf.mxu0
    %v186 = vadd.f32 %v138, %v185
    %187 = vmatmul.f32.gmra.mxu0 %v148
    %v188 = vpop.f32.mrf.mxu0
    %v189 = vadd.f32 %v138, %v188
    %190 = vmatmul.f32.gmra.mxu0 %v151
    %v191 = vpop.f32.mrf.mxu0
    %v192 = vadd.f32 %v138, %v191
    %193 = vmatmul.f32.gmra.mxu0 %v154
    %v194 = vpop.f32.mrf.mxu0
    %v195 = vadd.f32 %v138, %v194
    %196 = vmatmul.f32.gmra.mxu0 %v157
    %v197 = vpop.f32.mrf.mxu0
    %v198 = vadd.f32 %v138, %v197
    %199 = vmatmul.f32.gmra.mxu0 %v160
    %v200 = vpop.f32.mrf.mxu0
    %v201 = vadd.f32 %v138, %v200
    %202 = vmatmul.f32.gmra.mxu0 %v163
    %v203 = vpop.f32.mrf.mxu0
    %v204 = vadd.f32 %v138, %v203
    %205 = vdwg.mxu0
    %206 = vmatpush.msra.mxu0 0.0
    %207 = vmatpush.msra.mxu0 0.0
    %208 = vmatpush.msra.mxu0 0.0
    %209 = vmatpush.msra.mxu0 %v137
    %210 = vmatpush.msra.mxu0 %v135
    %211 = vmatpush.msra.mxu0 %v133
    %212 = vmatpush.msra.mxu0 %v131
    %213 = vmatpush.msra.mxu0 %v129
    %214 = vmatpush.msra.mxu0 %v127
    %215 = vmatpush.msra.mxu0 %v125
    %216 = vmatpush.msra.mxu0 %v123
    %217 = vmatpush.msra.mxu0 %v121
    %218 = vmatpush.msra.mxu0 %v119
    %219 = vmatpush.msra.mxu0 %v117
    %220 = vmatpush.msra.mxu0 %v115
    %221 = vmatpush.msra.mxu0 %v113
    %222 = vmatmul.f32.gmra.mxu0 %v142
    %v223 = vpop.f32.mrf.mxu0
    %v224 = vadd.f32 %v139, %v223
    %225 = vmatmul.f32.gmra.mxu0 %v145
    %v226 = vpop.f32.mrf.mxu0
    %v227 = vadd.f32 %v139, %v226
    %228 = vmatmul.f32.gmra.mxu0 %v148
    %v229 = vpop.f32.mrf.mxu0
    %v230 = vadd.f32 %v139, %v229
    %231 = vmatmul.f32.gmra.mxu0 %v151
    %v232 = vpop.f32.mrf.mxu0
    %v233 = vadd.f32 %v139, %v232
    %234 = vmatmul.f32.gmra.mxu0 %v154
    %v235 = vpop.f32.mrf.mxu0
    %v236 = vadd.f32 %v139, %v235
    %237 = vmatmul.f32.gmra.mxu0 %v157
    %v238 = vpop.f32.mrf.mxu0
    %v239 = vadd.f32 %v139, %v238
    %240 = vmatmul.f32.gmra.mxu0 %v160
    %v241 = vpop.f32.mrf.mxu0
    %v242 = vadd.f32 %v139, %v241
    %243 = vmatmul.f32.gmra.mxu0 %v163
    %v244 = vpop.f32.mrf.mxu0
    %v245 = vadd.f32 %v139, %v244
    %246 = vdwg.mxu0
    %247 = vadd.xlane.f32.xlu0 %v183
    %v248 = vpop.xlane.xlu0 %247
    %249 = vadd.xlane.f32.xlu0 %v186
    %v250 = vpop.xlane.xlu0 %249
    %251 = vadd.xlane.f32.xlu0 %v189
    %v252 = vpop.xlane.xlu0 %251
    %253 = vadd.xlane.f32.xlu0 %v192
    %v254 = vpop.xlane.xlu0 %253
    %255 = vadd.xlane.f32.xlu0 %v195
    %v256 = vpop.xlane.xlu0 %255
    %257 = vadd.xlane.f32.xlu0 %v198
    %v258 = vpop.xlane.xlu0 %257
    %259 = vadd.xlane.f32.xlu0 %v201
    %v260 = vpop.xlane.xlu0 %259
    %261 = vadd.xlane.f32.xlu0 %v204
    %v262 = vpop.xlane.xlu0 %261
    %v263 = vmul.f32 %v183, %v183
    %v264 = vmul.f32 %v186, %v186
    %v265 = vmul.f32 %v189, %v189
    %v266 = vmul.f32 %v192, %v192
    %v267 = vmul.f32 %v195, %v195
    %v268 = vmul.f32 %v198, %v198
    %v269 = vmul.f32 %v201, %v201
    %v270 = vmul.f32 %v204, %v204
    %271 = vadd.xlane.f32.xlu0 %v263
    %v272 = vpop.xlane.xlu0 %271
    %273 = vadd.xlane.f32.xlu0 %v264
    %v274 = vpop.xlane.xlu0 %273
    %275 = vadd.xlane.f32.xlu0 %v265
    %v276 = vpop.xlane.xlu0 %275
    %277 = vadd.xlane.f32.xlu0 %v266
    %v278 = vpop.xlane.xlu0 %277
    %279 = vadd.xlane.f32.xlu0 %v267
    %v280 = vpop.xlane.xlu0 %279
    %281 = vadd.xlane.f32.xlu0 %v268
    %v282 = vpop.xlane.xlu0 %281
    %283 = vadd.xlane.f32.xlu0 %v269
    %v284 = vpop.xlane.xlu0 %283
    %285 = vadd.xlane.f32.xlu0 %v270
    %v286 = vpop.xlane.xlu0 %285
    %v287 = vrcp.pop 100.0
    %v288 = vmul.f32 100.0, %v287
    %v289 = vsub.f32 1.0, %v288
    %v290 = vmul.f32 %v287, %v289
    %v291 = vadd.f32 %v287, %v290
    %vm292 = vweird.f32 %v287
    %v293 = vsel %vm292, %v287, %v291
    %v294 = vmul.f32 %v248, %v293
    %v295 = vmul.f32 %v250, %v293
    %v296 = vmul.f32 %v252, %v293
    %v297 = vmul.f32 %v254, %v293
    %v298 = vmul.f32 %v256, %v293
    %v299 = vmul.f32 %v258, %v293
    %v300 = vmul.f32 %v260, %v293
    %v301 = vmul.f32 %v262, %v293
    %v302 = vmul.f32 %v272, %v293
    %v303 = vmul.f32 %v274, %v293
    %v304 = vmul.f32 %v276, %v293
    %v305 = vmul.f32 %v278, %v293
    %v306 = vmul.f32 %v280, %v293
    %v307 = vmul.f32 %v282, %v293
    %v308 = vmul.f32 %v284, %v293
    %v309 = vmul.f32 %v286, %v293
    %v310 = vmul.f32 %v294, %v294
    %v311 = vmul.f32 %v295, %v295
    %v312 = vmul.f32 %v296, %v296
    %v313 = vmul.f32 %v297, %v297
    %v314 = vmul.f32 %v298, %v298
    %v315 = vmul.f32 %v299, %v299
    %v316 = vmul.f32 %v300, %v300
    %v317 = vmul.f32 %v301, %v301
    %v318 = vsub.f32 %v302, %v310
    %v319 = vsub.f32 %v303, %v311
    %v320 = vsub.f32 %v304, %v312
    %v321 = vsub.f32 %v305, %v313
    %v322 = vsub.f32 %v306, %v314
    %v323 = vsub.f32 %v307, %v315
    %v324 = vsub.f32 %v308, %v316
    %v325 = vsub.f32 %v309, %v317
    %v326 = vmax.f32 %v318, 0.0
    %v327 = vmax.f32 %v319, 0.0
    %v328 = vmax.f32 %v320, 0.0
    %v329 = vmax.f32 %v321, 0.0
    %v330 = vmax.f32 %v322, 0.0
    %v331 = vmax.f32 %v323, 0.0
    %v332 = vmax.f32 %v324, 0.0
    %v333 = vmax.f32 %v325, 0.0
    %v334 = vadd.f32 %v326, 1e-05
    %v335 = vadd.f32 %v327, 1e-05
    %v336 = vadd.f32 %v328, 1e-05
    %v337 = vadd.f32 %v329, 1e-05
    %v338 = vadd.f32 %v330, 1e-05
    %v339 = vadd.f32 %v331, 1e-05
    %v340 = vadd.f32 %v332, 1e-05
    %v341 = vadd.f32 %v333, 1e-05
    %v342 = vrsqrt.pop %v334
    %v343 = vmul.f32 %v342, %v334
    %v344 = vmul.f32 %v343, %v342
    %v345 = vmul.f32 0.5, %v344
    %v346 = vsub.f32 1.5, %v345
    %v347 = vmul.f32 %v342, %v346
    %vm348 = vweird.f32 %v334
    %vm349 = vweird.f32 %v342
    %vm350 = vmor %vm348, %vm349
    %v351 = vsel %vm350, %v342, %v347
    %v352 = vrsqrt.pop %v335
    %v353 = vmul.f32 %v352, %v335
    %v354 = vmul.f32 %v353, %v352
    %v355 = vmul.f32 0.5, %v354
    %v356 = vsub.f32 1.5, %v355
    %v357 = vmul.f32 %v352, %v356
    %vm358 = vweird.f32 %v335
    %vm359 = vweird.f32 %v352
    %vm360 = vmor %vm358, %vm359
    %v361 = vsel %vm360, %v352, %v357
    %v362 = vrsqrt.pop %v336
    %v363 = vmul.f32 %v362, %v336
    %v364 = vmul.f32 %v363, %v362
    %v365 = vmul.f32 0.5, %v364
    %v366 = vsub.f32 1.5, %v365
    %v367 = vmul.f32 %v362, %v366
    %vm368 = vweird.f32 %v336
    %vm369 = vweird.f32 %v362
    %vm370 = vmor %vm368, %vm369
    %v371 = vsel %vm370, %v362, %v367
    %v372 = vrsqrt.pop %v337
    %v373 = vmul.f32 %v372, %v337
    %v374 = vmul.f32 %v373, %v372
    %v375 = vmul.f32 0.5, %v374
    %v376 = vsub.f32 1.5, %v375
    %v377 = vmul.f32 %v372, %v376
    %vm378 = vweird.f32 %v337
    %vm379 = vweird.f32 %v372
    %vm380 = vmor %vm378, %vm379
    %v381 = vsel %vm380, %v372, %v377
    %v382 = vrsqrt.pop %v338
    %v383 = vmul.f32 %v382, %v338
    %v384 = vmul.f32 %v383, %v382
    %v385 = vmul.f32 0.5, %v384
    %v386 = vsub.f32 1.5, %v385
    %v387 = vmul.f32 %v382, %v386
    %vm388 = vweird.f32 %v338
    %vm389 = vweird.f32 %v382
    %vm390 = vmor %vm388, %vm389
    %v391 = vsel %vm390, %v382, %v387
    %v392 = vrsqrt.pop %v339
    %v393 = vmul.f32 %v392, %v339
    %v394 = vmul.f32 %v393, %v392
    %v395 = vmul.f32 0.5, %v394
    %v396 = vsub.f32 1.5, %v395
    %v397 = vmul.f32 %v392, %v396
    %vm398 = vweird.f32 %v339
    %vm399 = vweird.f32 %v392
    %vm400 = vmor %vm398, %vm399
    %v401 = vsel %vm400, %v392, %v397
    %v402 = vrsqrt.pop %v340
    %v403 = vmul.f32 %v402, %v340
    %v404 = vmul.f32 %v403, %v402
    %v405 = vmul.f32 0.5, %v404
    %v406 = vsub.f32 1.5, %v405
    %v407 = vmul.f32 %v402, %v406
    %vm408 = vweird.f32 %v340
    %vm409 = vweird.f32 %v402
    %vm410 = vmor %vm408, %vm409
    %v411 = vsel %vm410, %v402, %v407
    %v412 = vrsqrt.pop %v341
    %v413 = vmul.f32 %v412, %v341
    %v414 = vmul.f32 %v413, %v412
    %v415 = vmul.f32 0.5, %v414
    %v416 = vsub.f32 1.5, %v415
    %v417 = vmul.f32 %v412, %v416
    %vm418 = vweird.f32 %v341
    %vm419 = vweird.f32 %v412
    %vm420 = vmor %vm418, %vm419
    %v421 = vsel %vm420, %v412, %v417
    %v422 = vsub.f32 %v183, %v294
    %v423 = vsub.f32 %v186, %v295
    %v424 = vsub.f32 %v189, %v296
    %v425 = vsub.f32 %v192, %v297
    %v426 = vsub.f32 %v195, %v298
    %v427 = vsub.f32 %v198, %v299
    %v428 = vsub.f32 %v201, %v300
    %v429 = vsub.f32 %v204, %v301
    %v430 = vmul.f32 %v422, %v351
    %v431 = vmul.f32 %v423, %v361
    %v432 = vmul.f32 %v424, %v371
    %v433 = vmul.f32 %v425, %v381
    %v434 = vmul.f32 %v426, %v391
    %v435 = vmul.f32 %v427, %v401
    %v436 = vmul.f32 %v428, %v411
    %v437 = vmul.f32 %v429, %v421
    %v438 = vperm.slane %v110, 1
    %v439 = vmul.f32 %v430, %v438
    %v440 = vmul.f32 %v431, %v438
    %v441 = vmul.f32 %v432, %v438
    %v442 = vmul.f32 %v433, %v438
    %v443 = vmul.f32 %v434, %v438
    %v444 = vmul.f32 %v435, %v438
    %v445 = vmul.f32 %v436, %v438
    %v446 = vmul.f32 %v437, %v438
    %v447 = vperm.slane %v110, 2
    %v448 = vadd.f32 %v439, %v447
    %v449 = vadd.f32 %v440, %v447
    %v450 = vadd.f32 %v441, %v447
    %v451 = vadd.f32 %v442, %v447
    %v452 = vadd.f32 %v443, %v447
    %v453 = vadd.f32 %v444, %v447
    %v454 = vadd.f32 %v445, %v447
    %v455 = vadd.f32 %v446, %v447
    %456 = vadd.xlane.f32.xlu0 %v224
    %v457 = vpop.xlane.xlu0 %456
    %458 = vadd.xlane.f32.xlu0 %v227
    %v459 = vpop.xlane.xlu0 %458
    %460 = vadd.xlane.f32.xlu0 %v230
    %v461 = vpop.xlane.xlu0 %460
    %462 = vadd.xlane.f32.xlu0 %v233
    %v463 = vpop.xlane.xlu0 %462
    %464 = vadd.xlane.f32.xlu0 %v236
    %v465 = vpop.xlane.xlu0 %464
    %466 = vadd.xlane.f32.xlu0 %v239
    %v467 = vpop.xlane.xlu0 %466
    %468 = vadd.xlane.f32.xlu0 %v242
    %v469 = vpop.xlane.xlu0 %468
    %470 = vadd.xlane.f32.xlu0 %v245
    %v471 = vpop.xlane.xlu0 %470
    %v472 = vmul.f32 %v224, %v224
    %v473 = vmul.f32 %v227, %v227
    %v474 = vmul.f32 %v230, %v230
    %v475 = vmul.f32 %v233, %v233
    %v476 = vmul.f32 %v236, %v236
    %v477 = vmul.f32 %v239, %v239
    %v478 = vmul.f32 %v242, %v242
    %v479 = vmul.f32 %v245, %v245
    %480 = vadd.xlane.f32.xlu0 %v472
    %v481 = vpop.xlane.xlu0 %480
    %482 = vadd.xlane.f32.xlu0 %v473
    %v483 = vpop.xlane.xlu0 %482
    %484 = vadd.xlane.f32.xlu0 %v474
    %v485 = vpop.xlane.xlu0 %484
    %486 = vadd.xlane.f32.xlu0 %v475
    %v487 = vpop.xlane.xlu0 %486
    %488 = vadd.xlane.f32.xlu0 %v476
    %v489 = vpop.xlane.xlu0 %488
    %490 = vadd.xlane.f32.xlu0 %v477
    %v491 = vpop.xlane.xlu0 %490
    %492 = vadd.xlane.f32.xlu0 %v478
    %v493 = vpop.xlane.xlu0 %492
    %494 = vadd.xlane.f32.xlu0 %v479
    %v495 = vpop.xlane.xlu0 %494
    %v496 = vrcp.pop 20.0
    %v497 = vmul.f32 20.0, %v496
    %v498 = vsub.f32 1.0, %v497
    %v499 = vmul.f32 %v496, %v498
    %v500 = vadd.f32 %v496, %v499
    %vm501 = vweird.f32 %v496
    %v502 = vsel %vm501, %v496, %v500
    %v503 = vmul.f32 %v457, %v502
    %v504 = vmul.f32 %v459, %v502
    %v505 = vmul.f32 %v461, %v502
    %v506 = vmul.f32 %v463, %v502
    %v507 = vmul.f32 %v465, %v502
    %v508 = vmul.f32 %v467, %v502
    %v509 = vmul.f32 %v469, %v502
    %v510 = vmul.f32 %v471, %v502
    %v511 = vmul.f32 %v481, %v502
    %v512 = vmul.f32 %v483, %v502
    %v513 = vmul.f32 %v485, %v502
    %v514 = vmul.f32 %v487, %v502
    %v515 = vmul.f32 %v489, %v502
    %v516 = vmul.f32 %v491, %v502
    %v517 = vmul.f32 %v493, %v502
    %v518 = vmul.f32 %v495, %v502
    %v519 = vmul.f32 %v503, %v503
    %v520 = vmul.f32 %v504, %v504
    %v521 = vmul.f32 %v505, %v505
    %v522 = vmul.f32 %v506, %v506
    %v523 = vmul.f32 %v507, %v507
    %v524 = vmul.f32 %v508, %v508
    %v525 = vmul.f32 %v509, %v509
    %v526 = vmul.f32 %v510, %v510
    %v527 = vsub.f32 %v511, %v519
    %v528 = vsub.f32 %v512, %v520
    %v529 = vsub.f32 %v513, %v521
    %v530 = vsub.f32 %v514, %v522
    %v531 = vsub.f32 %v515, %v523
    %v532 = vsub.f32 %v516, %v524
    %v533 = vsub.f32 %v517, %v525
    %v534 = vsub.f32 %v518, %v526
    %v535 = vmax.f32 %v527, 0.0
    %v536 = vmax.f32 %v528, 0.0
    %v537 = vmax.f32 %v529, 0.0
    %v538 = vmax.f32 %v530, 0.0
    %v539 = vmax.f32 %v531, 0.0
    %v540 = vmax.f32 %v532, 0.0
    %v541 = vmax.f32 %v533, 0.0
    %v542 = vmax.f32 %v534, 0.0
    %v543 = vadd.f32 %v535, 1e-05
    %v544 = vadd.f32 %v536, 1e-05
    %v545 = vadd.f32 %v537, 1e-05
    %v546 = vadd.f32 %v538, 1e-05
    %v547 = vadd.f32 %v539, 1e-05
    %v548 = vadd.f32 %v540, 1e-05
    %v549 = vadd.f32 %v541, 1e-05
    %v550 = vadd.f32 %v542, 1e-05
    %v551 = vrsqrt.pop %v543
    %v552 = vmul.f32 %v551, %v543
    %v553 = vmul.f32 %v552, %v551
    %v554 = vmul.f32 0.5, %v553
    %v555 = vsub.f32 1.5, %v554
    %v556 = vmul.f32 %v551, %v555
    %vm557 = vweird.f32 %v543
    %vm558 = vweird.f32 %v551
    %vm559 = vmor %vm557, %vm558
    %v560 = vsel %vm559, %v551, %v556
    %v561 = vrsqrt.pop %v544
    %v562 = vmul.f32 %v561, %v544
    %v563 = vmul.f32 %v562, %v561
    %v564 = vmul.f32 0.5, %v563
    %v565 = vsub.f32 1.5, %v564
    %v566 = vmul.f32 %v561, %v565
    %vm567 = vweird.f32 %v544
    %vm568 = vweird.f32 %v561
    %vm569 = vmor %vm567, %vm568
    %v570 = vsel %vm569, %v561, %v566
    %v571 = vrsqrt.pop %v545
    %v572 = vmul.f32 %v571, %v545
    %v573 = vmul.f32 %v572, %v571
    %v574 = vmul.f32 0.5, %v573
    %v575 = vsub.f32 1.5, %v574
    %v576 = vmul.f32 %v571, %v575
    %vm577 = vweird.f32 %v545
    %vm578 = vweird.f32 %v571
    %vm579 = vmor %vm577, %vm578
    %v580 = vsel %vm579, %v571, %v576
    %v581 = vrsqrt.pop %v546
    %v582 = vmul.f32 %v581, %v546
    %v583 = vmul.f32 %v582, %v581
    %v584 = vmul.f32 0.5, %v583
    %v585 = vsub.f32 1.5, %v584
    %v586 = vmul.f32 %v581, %v585
    %vm587 = vweird.f32 %v546
    %vm588 = vweird.f32 %v581
    %vm589 = vmor %vm587, %vm588
    %v590 = vsel %vm589, %v581, %v586
    %v591 = vrsqrt.pop %v547
    %v592 = vmul.f32 %v591, %v547
    %v593 = vmul.f32 %v592, %v591
    %v594 = vmul.f32 0.5, %v593
    %v595 = vsub.f32 1.5, %v594
    %v596 = vmul.f32 %v591, %v595
    %vm597 = vweird.f32 %v547
    %vm598 = vweird.f32 %v591
    %vm599 = vmor %vm597, %vm598
    %v600 = vsel %vm599, %v591, %v596
    %v601 = vrsqrt.pop %v548
    %v602 = vmul.f32 %v601, %v548
    %v603 = vmul.f32 %v602, %v601
    %v604 = vmul.f32 0.5, %v603
    %v605 = vsub.f32 1.5, %v604
    %v606 = vmul.f32 %v601, %v605
    %vm607 = vweird.f32 %v548
    %vm608 = vweird.f32 %v601
    %vm609 = vmor %vm607, %vm608
    %v610 = vsel %vm609, %v601, %v606
    %v611 = vrsqrt.pop %v549
    %v612 = vmul.f32 %v611, %v549
    %v613 = vmul.f32 %v612, %v611
    %v614 = vmul.f32 0.5, %v613
    %v615 = vsub.f32 1.5, %v614
    %v616 = vmul.f32 %v611, %v615
    %vm617 = vweird.f32 %v549
    %vm618 = vweird.f32 %v611
    %vm619 = vmor %vm617, %vm618
    %v620 = vsel %vm619, %v611, %v616
    %v621 = vrsqrt.pop %v550
    %v622 = vmul.f32 %v621, %v550
    %v623 = vmul.f32 %v622, %v621
    %v624 = vmul.f32 0.5, %v623
    %v625 = vsub.f32 1.5, %v624
    %v626 = vmul.f32 %v621, %v625
    %vm627 = vweird.f32 %v550
    %vm628 = vweird.f32 %v621
    %vm629 = vmor %vm627, %vm628
    %v630 = vsel %vm629, %v621, %v626
    %v631 = vsub.f32 %v224, %v503
    %v632 = vsub.f32 %v227, %v504
    %v633 = vsub.f32 %v230, %v505
    %v634 = vsub.f32 %v233, %v506
    %v635 = vsub.f32 %v236, %v507
    %v636 = vsub.f32 %v239, %v508
    %v637 = vsub.f32 %v242, %v509
    %v638 = vsub.f32 %v245, %v510
    %v639 = vmul.f32 %v631, %v560
    %v640 = vmul.f32 %v632, %v570
    %v641 = vmul.f32 %v633, %v580
    %v642 = vmul.f32 %v634, %v590
    %v643 = vmul.f32 %v635, %v600
    %v644 = vmul.f32 %v636, %v610
    %v645 = vmul.f32 %v637, %v620
    %v646 = vmul.f32 %v638, %v630
    %v647 = vperm.slane %v111, 1
    %v648 = vmul.f32 %v639, %v647
    %v649 = vmul.f32 %v640, %v647
    %v650 = vmul.f32 %v641, %v647
    %v651 = vmul.f32 %v642, %v647
    %v652 = vmul.f32 %v643, %v647
    %v653 = vmul.f32 %v644, %v647
    %v654 = vmul.f32 %v645, %v647
    %v655 = vmul.f32 %v646, %v647
    %v656 = vperm.slane %v111, 2
    %v657 = vadd.f32 %v648, %v656
    %v658 = vadd.f32 %v649, %v656
    %v659 = vadd.f32 %v650, %v656
    %v660 = vadd.f32 %v651, %v656
    %v661 = vadd.f32 %v652, %v656
    %v662 = vadd.f32 %v653, %v656
    %v663 = vadd.f32 %v654, %v656
    %v664 = vadd.f32 %v655, %v656
    %v665 = vld [vmem:[%s2] sm:$0xff]
    %v666 = vld [vmem:[%s2 + $0x8] sm:$0xff]
    %v667 = vld [vmem:[%s2 + $0x10] sm:$0xff]
    %v668 = vld [vmem:[%s2 + $0x18] sm:$0xff]
    %v669 = vld [vmem:[%s2 + $0x20] sm:$0xff]
    %v670 = vld [vmem:[%s2 + $0x28] sm:$0xff]
    %v671 = vld [vmem:[%s2 + $0x30] sm:$0xff]
    %v672 = vld [vmem:[%s2 + $0x38] sm:$0xff]
    %v673 = vld [vmem:[%s2 + $0x40] sm:$0xff]
    %v674 = vld [vmem:[%s2 + $0x48] sm:$0xff]
    %v675 = vld [vmem:[%s2 + $0x50] sm:$0xff]
    %v676 = vld [vmem:[%s2 + $0x58] sm:$0xff]
    %v677 = vld [vmem:[%s2 + $0x60] sm:$0xff]
    %v678 = vld [vmem:[%s2 + $0x68] sm:$0xff]
    %v679 = vld [vmem:[%s2 + $0x70] sm:$0xff]
    %v680 = vld [vmem:[%s2 + $0x78] sm:$0xff]
    %v681 = vld [vmem:[%s2 + $0x80] sm:$0xff]
    %v682 = vld [vmem:[%s2 + $0x88] sm:$0xff]
    %v683 = vld [vmem:[%s2 + $0x90] sm:$0xff]
    %v684 = vld [vmem:[%s2 + $0x98] sm:$0xff]
    %v685 = vld [vmem:[%s2 + $0xa0] sm:$0xff]
    %v686 = vld [vmem:[%s2 + $0xa8] sm:$0xff]
    %v687 = vld [vmem:[%s2 + $0xb0] sm:$0xff]
    %v688 = vld [vmem:[%s2 + $0xb8] sm:$0xff]
    %v689 = vld [vmem:[%s2 + $0xc0] sm:$0xff]
    %v690 = vld [vmem:[%s2 + $0xc8] sm:$0xff]
    %v691 = vld [vmem:[%s2 + $0xd0] sm:$0xff]
    %v692 = vld [vmem:[%s2 + $0xd8] sm:$0xff]
    %v693 = vld [vmem:[%s2 + $0xe0] sm:$0xff]
    %v694 = vld [vmem:[%s2 + $0xe8] sm:$0xff]
    %v695 = vld [vmem:[%s2 + $0xf0] sm:$0xff]
    %v696 = vld [vmem:[%s2 + $0xf8] sm:$0xff]
    %v697 = vld [vmem:[#allocation6] sm:$0xff]
    %v698 = vld [vmem:[#allocation6 + $0x8] sm:$0xff]
    %v699 = vld [vmem:[#allocation6 + $0x10] sm:$0xff]
    %v700 = vld [vmem:[#allocation6 + $0x18] sm:$0xff]
    %v701 = vld [vmem:[#allocation6 + $0x20] sm:$0xff]
    %v702 = vld [vmem:[#allocation6 + $0x28] sm:$0xff]
    %v703 = vld [vmem:[#allocation6 + $0x30] sm:$0xff]
    %v704 = vld [vmem:[#allocation6 + $0x38] sm:$0xff]
    %v705 = vld [vmem:[#allocation6 + $0x40] sm:$0xff]
    %v706 = vld [vmem:[#allocation6 + $0x48] sm:$0xff]
    %v707 = vld [vmem:[#allocation6 + $0x50] sm:$0xff]
    %v708 = vld [vmem:[#allocation6 + $0x58] sm:$0xff]
    %v709 = vld [vmem:[#allocation6 + $0x60] sm:$0xff]
    %v710 = vld [vmem:[#allocation6 + $0x68] sm:$0xff]
    %v711 = vld [vmem:[#allocation6 + $0x70] sm:$0xff]
    %v712 = vld [vmem:[#allocation6 + $0x78] sm:$0xff]
    %v713 = vld [vmem:[#allocation6 + $0x80] sm:$0xff]
    %v714 = vld [vmem:[#allocation6 + $0x88] sm:$0xff]
    %v715 = vld [vmem:[#allocation6 + $0x90] sm:$0xff]
    %v716 = vld [vmem:[#allocation6 + $0x98] sm:$0xff]
    %v717 = vld [vmem:[#allocation6 + $0xa0] sm:$0xff]
    %v718 = vld [vmem:[#allocation6 + $0xa8] sm:$0xff]
    %v719 = vld [vmem:[#allocation6 + $0xb0] sm:$0xff]
    %v720 = vld [vmem:[#allocation6 + $0xb8] sm:$0xff]
    %v721 = vld [vmem:[#allocation6 + $0xc0] sm:$0xff]
    %v722 = vld [vmem:[#allocation6 + $0xc8] sm:$0xff]
    %v723 = vld [vmem:[#allocation6 + $0xd0] sm:$0xff]
    %v724 = vld [vmem:[#allocation6 + $0xd8] sm:$0xff]
    %v725 = vld [vmem:[#allocation6 + $0xe0] sm:$0xff]
    %v726 = vld [vmem:[#allocation6 + $0xe8] sm:$0xff]
    %v727 = vld [vmem:[#allocation6 + $0xf0] sm:$0xff]
    %v728 = vld [vmem:[#allocation6 + $0xf8] sm:$0xff]
    %729 = vmatpush.msra.mxu0 %v727
    %730 = vmatpush.msra.mxu0 %v725
    %731 = vmatpush.msra.mxu0 %v723
    %732 = vmatpush.msra.mxu0 %v721
    %733 = vmatpush.msra.mxu0 %v719
    %734 = vmatpush.msra.mxu0 %v717
    %735 = vmatpush.msra.mxu0 %v715
    %736 = vmatpush.msra.mxu0 %v713
    %737 = vmatpush.msra.mxu0 %v711
    %738 = vmatpush.msra.mxu0 %v709
    %739 = vmatpush.msra.mxu0 %v707
    %740 = vmatpush.msra.mxu0 %v705
    %741 = vmatpush.msra.mxu0 %v703
    %742 = vmatpush.msra.mxu0 %v701
    %743 = vmatpush.msra.mxu0 %v699
    %744 = vmatpush.msra.mxu0 %v697
    %745 = vmatmul.f32.gmra.mxu0 %v657
    %v746 = vpop.f32.mrf.mxu0
    %v747 = vadd.f32 0.0, %v746
    %748 = vmatmul.f32.gmra.mxu0 %v658
    %v749 = vpop.f32.mrf.mxu0
    %v750 = vadd.f32 0.0, %v749
    %751 = vmatmul.f32.gmra.mxu0 %v659
    %v752 = vpop.f32.mrf.mxu0
    %v753 = vadd.f32 0.0, %v752
    %754 = vmatmul.f32.gmra.mxu0 %v660
    %v755 = vpop.f32.mrf.mxu0
    %v756 = vadd.f32 0.0, %v755
    %757 = vmatmul.f32.gmra.mxu0 %v661
    %v758 = vpop.f32.mrf.mxu0
    %v759 = vadd.f32 0.0, %v758
    %760 = vmatmul.f32.gmra.mxu0 %v662
    %v761 = vpop.f32.mrf.mxu0
    %v762 = vadd.f32 0.0, %v761
    %763 = vmatmul.f32.gmra.mxu0 %v663
    %v764 = vpop.f32.mrf.mxu0
    %v765 = vadd.f32 0.0, %v764
    %766 = vmatmul.f32.gmra.mxu0 %v664
    %v767 = vpop.f32.mrf.mxu0
    %v768 = vadd.f32 0.0, %v767
    %769 = vdwg.mxu0
    %770 = vmatpush.msra.mxu0 %v728
    %771 = vmatpush.msra.mxu0 %v726
    %772 = vmatpush.msra.mxu0 %v724
    %773 = vmatpush.msra.mxu0 %v722
    %774 = vmatpush.msra.mxu0 %v720
    %775 = vmatpush.msra.mxu0 %v718
    %776 = vmatpush.msra.mxu0 %v716
    %777 = vmatpush.msra.mxu0 %v714
    %778 = vmatpush.msra.mxu0 %v712
    %779 = vmatpush.msra.mxu0 %v710
    %780 = vmatpush.msra.mxu0 %v708
    %781 = vmatpush.msra.mxu0 %v706
    %782 = vmatpush.msra.mxu0 %v704
    %783 = vmatpush.msra.mxu0 %v702
    %784 = vmatpush.msra.mxu0 %v700
    %785 = vmatpush.msra.mxu0 %v698
    %786 = vmatmul.f32.gmra.mxu0 %v657
    %v787 = vpop.f32.mrf.mxu0
    %v788 = vadd.f32 0.0, %v787
    %789 = vmatmul.f32.gmra.mxu0 %v658
    %v790 = vpop.f32.mrf.mxu0
    %v791 = vadd.f32 0.0, %v790
    %792 = vmatmul.f32.gmra.mxu0 %v659
    %v793 = vpop.f32.mrf.mxu0
    %v794 = vadd.f32 0.0, %v793
    %795 = vmatmul.f32.gmra.mxu0 %v660
    %v796 = vpop.f32.mrf.mxu0
    %v797 = vadd.f32 0.0, %v796
    %798 = vmatmul.f32.gmra.mxu0 %v661
    %v799 = vpop.f32.mrf.mxu0
    %v800 = vadd.f32 0.0, %v799
    %801 = vmatmul.f32.gmra.mxu0 %v662
    %v802 = vpop.f32.mrf.mxu0
    %v803 = vadd.f32 0.0, %v802
    %804 = vmatmul.f32.gmra.mxu0 %v663
    %v805 = vpop.f32.mrf.mxu0
    %v806 = vadd.f32 0.0, %v805
    %807 = vmatmul.f32.gmra.mxu0 %v664
    %v808 = vpop.f32.mrf.mxu0
    %v809 = vadd.f32 0.0, %v808
    %810 = vdwg.mxu0
    %811 = vmatpush.msra.mxu0 %v695
    %812 = vmatpush.msra.mxu0 %v693
    %813 = vmatpush.msra.mxu0 %v691
    %814 = vmatpush.msra.mxu0 %v689
    %815 = vmatpush.msra.mxu0 %v687
    %816 = vmatpush.msra.mxu0 %v685
    %817 = vmatpush.msra.mxu0 %v683
    %818 = vmatpush.msra.mxu0 %v681
    %819 = vmatpush.msra.mxu0 %v679
    %820 = vmatpush.msra.mxu0 %v677
    %821 = vmatpush.msra.mxu0 %v675
    %822 = vmatpush.msra.mxu0 %v673
    %823 = vmatpush.msra.mxu0 %v671
    %824 = vmatpush.msra.mxu0 %v669
    %825 = vmatpush.msra.mxu0 %v667
    %826 = vmatpush.msra.mxu0 %v665
    %827 = vmatmul.f32.gmra.mxu0 %v448
    %v828 = vpop.f32.mrf.mxu0
    %v829 = vadd.f32 %v747, %v828
    %830 = vmatmul.f32.gmra.mxu0 %v449
    %v831 = vpop.f32.mrf.mxu0
    %v832 = vadd.f32 %v750, %v831
    %833 = vmatmul.f32.gmra.mxu0 %v450
    %v834 = vpop.f32.mrf.mxu0
    %v835 = vadd.f32 %v753, %v834
    %836 = vmatmul.f32.gmra.mxu0 %v451
    %v837 = vpop.f32.mrf.mxu0
    %v838 = vadd.f32 %v756, %v837
    %839 = vmatmul.f32.gmra.mxu0 %v452
    %v840 = vpop.f32.mrf.mxu0
    %v841 = vadd.f32 %v759, %v840
    %842 = vmatmul.f32.gmra.mxu0 %v453
    %v843 = vpop.f32.mrf.mxu0
    %v844 = vadd.f32 %v762, %v843
    %845 = vmatmul.f32.gmra.mxu0 %v454
    %v846 = vpop.f32.mrf.mxu0
    %v847 = vadd.f32 %v765, %v846
    %848 = vmatmul.f32.gmra.mxu0 %v455
    %v849 = vpop.f32.mrf.mxu0
    %v850 = vadd.f32 %v768, %v849
    %851 = vdwg.mxu0
    %852 = vmatpush.msra.mxu0 %v696
    %853 = vmatpush.msra.mxu0 %v694
    %854 = vmatpush.msra.mxu0 %v692
    %855 = vmatpush.msra.mxu0 %v690
    %856 = vmatpush.msra.mxu0 %v688
    %857 = vmatpush.msra.mxu0 %v686
    %858 = vmatpush.msra.mxu0 %v684
    %859 = vmatpush.msra.mxu0 %v682
    %860 = vmatpush.msra.mxu0 %v680
    %861 = vmatpush.msra.mxu0 %v678
    %862 = vmatpush.msra.mxu0 %v676
    %863 = vmatpush.msra.mxu0 %v674
    %864 = vmatpush.msra.mxu0 %v672
    %865 = vmatpush.msra.mxu0 %v670
    %866 = vmatpush.msra.mxu0 %v668
    %867 = vmatpush.msra.mxu0 %v666
    %868 = vmatmul.f32.gmra.mxu0 %v448
    %v869 = vpop.f32.mrf.mxu0
    %v870 = vadd.f32 %v788, %v869
    %871 = vmatmul.f32.gmra.mxu0 %v449
    %v872 = vpop.f32.mrf.mxu0
    %v873 = vadd.f32 %v791, %v872
    %874 = vmatmul.f32.gmra.mxu0 %v450
    %v875 = vpop.f32.mrf.mxu0
    %v876 = vadd.f32 %v794, %v875
    %877 = vmatmul.f32.gmra.mxu0 %v451
    %v878 = vpop.f32.mrf.mxu0
    %v879 = vadd.f32 %v797, %v878
    %880 = vmatmul.f32.gmra.mxu0 %v452
    %v881 = vpop.f32.mrf.mxu0
    %v882 = vadd.f32 %v800, %v881
    %883 = vmatmul.f32.gmra.mxu0 %v453
    %v884 = vpop.f32.mrf.mxu0
    %v885 = vadd.f32 %v803, %v884
    %886 = vmatmul.f32.gmra.mxu0 %v454
    %v887 = vpop.f32.mrf.mxu0
    %v888 = vadd.f32 %v806, %v887
    %889 = vmatmul.f32.gmra.mxu0 %v455
    %v890 = vpop.f32.mrf.mxu0
    %v891 = vadd.f32 %v809, %v890
    %892 = vdwg.mxu0
    %v893 = vperm.slane %v110, 3
    %v894 = vperm.slane %v111, 3
    %v895 = vadd.f32 %v829, %v893
    %v896 = vadd.f32 %v870, %v894
    %v897 = vadd.f32 %v832, %v893
    %v898 = vadd.f32 %v873, %v894
    %v899 = vadd.f32 %v835, %v893
    %v900 = vadd.f32 %v876, %v894
    %v901 = vadd.f32 %v838, %v893
    %v902 = vadd.f32 %v879, %v894
    %v903 = vadd.f32 %v841, %v893
    %v904 = vadd.f32 %v882, %v894
    %v905 = vadd.f32 %v844, %v893
    %v906 = vadd.f32 %v885, %v894
    %v907 = vadd.f32 %v847, %v893
    %v908 = vadd.f32 %v888, %v894
    %v909 = vadd.f32 %v850, %v893
    %v910 = vadd.f32 %v891, %v894
    %v911 = vmax.f32 %v895, 0.0
    %v912 = vmax.f32 %v896, 0.0
    %v913 = vmax.f32 %v897, 0.0
    %v914 = vmax.f32 %v898, 0.0
    %v915 = vmax.f32 %v899, 0.0
    %v916 = vmax.f32 %v900, 0.0
    %v917 = vmax.f32 %v901, 0.0
    %v918 = vmax.f32 %v902, 0.0
    %v919 = vmax.f32 %v903, 0.0
    %v920 = vmax.f32 %v904, 0.0
    %v921 = vmax.f32 %v905, 0.0
    %v922 = vmax.f32 %v906, 0.0
    %v923 = vmax.f32 %v907, 0.0
    %v924 = vmax.f32 %v908, 0.0
    %v925 = vmax.f32 %v909, 0.0
    %v926 = vmax.f32 %v910, 0.0
    %v927 = vadd.f32 %v911, %v912
    %928 = vadd.xlane.f32.xlu0 %v927
    %v929 = vpop.xlane.xlu0 %928
    %v930 = vadd.f32 %v913, %v914
    %931 = vadd.xlane.f32.xlu0 %v930
    %v932 = vpop.xlane.xlu0 %931
    %v933 = vadd.f32 %v915, %v916
    %934 = vadd.xlane.f32.xlu0 %v933
    %v935 = vpop.xlane.xlu0 %934
    %v936 = vadd.f32 %v917, %v918
    %937 = vadd.xlane.f32.xlu0 %v936
    %v938 = vpop.xlane.xlu0 %937
    %v939 = vadd.f32 %v919, %v920
    %940 = vadd.xlane.f32.xlu0 %v939
    %v941 = vpop.xlane.xlu0 %940
    %v942 = vadd.f32 %v921, %v922
    %943 = vadd.xlane.f32.xlu0 %v942
    %v944 = vpop.xlane.xlu0 %943
    %v945 = vadd.f32 %v923, %v924
    %946 = vadd.xlane.f32.xlu0 %v945
    %v947 = vpop.xlane.xlu0 %946
    %v948 = vadd.f32 %v925, %v926
    %949 = vadd.xlane.f32.xlu0 %v948
    %v950 = vpop.xlane.xlu0 %949
    %v951 = vmul.f32 %v911, %v911
    %v952 = vmul.f32 %v912, %v912
    %v953 = vmul.f32 %v913, %v913
    %v954 = vmul.f32 %v914, %v914
    %v955 = vmul.f32 %v915, %v915
    %v956 = vmul.f32 %v916, %v916
    %v957 = vmul.f32 %v917, %v917
    %v958 = vmul.f32 %v918, %v918
    %v959 = vmul.f32 %v919, %v919
    %v960 = vmul.f32 %v920, %v920
    %v961 = vmul.f32 %v921, %v921
    %v962 = vmul.f32 %v922, %v922
    %v963 = vmul.f32 %v923, %v923
    %v964 = vmul.f32 %v924, %v924
    %v965 = vmul.f32 %v925, %v925
    %v966 = vmul.f32 %v926, %v926
    %v967 = vadd.f32 %v951, %v952
    %968 = vadd.xlane.f32.xlu0 %v967
    %v969 = vpop.xlane.xlu0 %968
    %v970 = vadd.f32 %v953, %v954
    %971 = vadd.xlane.f32.xlu0 %v970
    %v972 = vpop.xlane.xlu0 %971
    %v973 = vadd.f32 %v955, %v956
    %974 = vadd.xlane.f32.xlu0 %v973
    %v975 = vpop.xlane.xlu0 %974
    %v976 = vadd.f32 %v957, %v958
    %977 = vadd.xlane.f32.xlu0 %v976
    %v978 = vpop.xlane.xlu0 %977
    %v979 = vadd.f32 %v959, %v960
    %980 = vadd.xlane.f32.xlu0 %v979
    %v981 = vpop.xlane.xlu0 %980
    %v982 = vadd.f32 %v961, %v962
    %983 = vadd.xlane.f32.xlu0 %v982
    %v984 = vpop.xlane.xlu0 %983
    %v985 = vadd.f32 %v963, %v964
    %986 = vadd.xlane.f32.xlu0 %v985
    %v987 = vpop.xlane.xlu0 %986
    %v988 = vadd.f32 %v965, %v966
    %989 = vadd.xlane.f32.xlu0 %v988
    %v990 = vpop.xlane.xlu0 %989
    %v991 = vrcp.pop 200.0
    %v992 = vmul.f32 200.0, %v991
    %v993 = vsub.f32 1.0, %v992
    %v994 = vmul.f32 %v991, %v993
    %v995 = vadd.f32 %v991, %v994
    %vm996 = vweird.f32 %v991
    %v997 = vsel %vm996, %v991, %v995
    %v998 = vmul.f32 %v929, %v997
    %v999 = vmul.f32 %v932, %v997
    %v1000 = vmul.f32 %v935, %v997
    %v1001 = vmul.f32 %v938, %v997
    %v1002 = vmul.f32 %v941, %v997
    %v1003 = vmul.f32 %v944, %v997
    %v1004 = vmul.f32 %v947, %v997
    %v1005 = vmul.f32 %v950, %v997
    %v1006 = vmul.f32 %v969, %v997
    %v1007 = vmul.f32 %v972, %v997
    %v1008 = vmul.f32 %v975, %v997
    %v1009 = vmul.f32 %v978, %v997
    %v1010 = vmul.f32 %v981, %v997
    %v1011 = vmul.f32 %v984, %v997
    %v1012 = vmul.f32 %v987, %v997
    %v1013 = vmul.f32 %v990, %v997
    %v1014 = vmul.f32 %v998, %v998
    %v1015 = vmul.f32 %v999, %v999
    %v1016 = vmul.f32 %v1000, %v1000
    %v1017 = vmul.f32 %v1001, %v1001
    %v1018 = vmul.f32 %v1002, %v1002
    %v1019 = vmul.f32 %v1003, %v1003
    %v1020 = vmul.f32 %v1004, %v1004
    %v1021 = vmul.f32 %v1005, %v1005
    %v1022 = vsub.f32 %v1006, %v1014
    %v1023 = vsub.f32 %v1007, %v1015
    %v1024 = vsub.f32 %v1008, %v1016
    %v1025 = vsub.f32 %v1009, %v1017
    %v1026 = vsub.f32 %v1010, %v1018
    %v1027 = vsub.f32 %v1011, %v1019
    %v1028 = vsub.f32 %v1012, %v1020
    %v1029 = vsub.f32 %v1013, %v1021
    %v1030 = vmax.f32 %v1022, 0.0
    %v1031 = vmax.f32 %v1023, 0.0
    %v1032 = vmax.f32 %v1024, 0.0
    %v1033 = vmax.f32 %v1025, 0.0
    %v1034 = vmax.f32 %v1026, 0.0
    %v1035 = vmax.f32 %v1027, 0.0
    %v1036 = vmax.f32 %v1028, 0.0
    %v1037 = vmax.f32 %v1029, 0.0
    %v1038 = vadd.f32 %v1030, 1e-05
    %v1039 = vadd.f32 %v1031, 1e-05
    %v1040 = vadd.f32 %v1032, 1e-05
    %v1041 = vadd.f32 %v1033, 1e-05
    %v1042 = vadd.f32 %v1034, 1e-05
    %v1043 = vadd.f32 %v1035, 1e-05
    %v1044 = vadd.f32 %v1036, 1e-05
    %v1045 = vadd.f32 %v1037, 1e-05
    %v1046 = vrsqrt.pop %v1038
    %v1047 = vmul.f32 %v1046, %v1038
    %v1048 = vmul.f32 %v1047, %v1046
    %v1049 = vmul.f32 0.5, %v1048
    %v1050 = vsub.f32 1.5, %v1049
    %v1051 = vmul.f32 %v1046, %v1050
    %vm1052 = vweird.f32 %v1038
    %vm1053 = vweird.f32 %v1046
    %vm1054 = vmor %vm1052, %vm1053
    %v1055 = vsel %vm1054, %v1046, %v1051
    %v1056 = vrsqrt.pop %v1039
    %v1057 = vmul.f32 %v1056, %v1039
    %v1058 = vmul.f32 %v1057, %v1056
    %v1059 = vmul.f32 0.5, %v1058
    %v1060 = vsub.f32 1.5, %v1059
    %v1061 = vmul.f32 %v1056, %v1060
    %vm1062 = vweird.f32 %v1039
    %vm1063 = vweird.f32 %v1056
    %vm1064 = vmor %vm1062, %vm1063
    %v1065 = vsel %vm1064, %v1056, %v1061
    %v1066 = vrsqrt.pop %v1040
    %v1067 = vmul.f32 %v1066, %v1040
    %v1068 = vmul.f32 %v1067, %v1066
    %v1069 = vmul.f32 0.5, %v1068
    %v1070 = vsub.f32 1.5, %v1069
    %v1071 = vmul.f32 %v1066, %v1070
    %vm1072 = vweird.f32 %v1040
    %vm1073 = vweird.f32 %v1066
    %vm1074 = vmor %vm1072, %vm1073
    %v1075 = vsel %vm1074, %v1066, %v1071
    %v1076 = vrsqrt.pop %v1041
    %v1077 = vmul.f32 %v1076, %v1041
    %v1078 = vmul.f32 %v1077, %v1076
    %v1079 = vmul.f32 0.5, %v1078
    %v1080 = vsub.f32 1.5, %v1079
    %v1081 = vmul.f32 %v1076, %v1080
    %vm1082 = vweird.f32 %v1041
    %vm1083 = vweird.f32 %v1076
    %vm1084 = vmor %vm1082, %vm1083
    %v1085 = vsel %vm1084, %v1076, %v1081
    %v1086 = vrsqrt.pop %v1042
    %v1087 = vmul.f32 %v1086, %v1042
    %v1088 = vmul.f32 %v1087, %v1086
    %v1089 = vmul.f32 0.5, %v1088
    %v1090 = vsub.f32 1.5, %v1089
    %v1091 = vmul.f32 %v1086, %v1090
    %vm1092 = vweird.f32 %v1042
    %vm1093 = vweird.f32 %v1086
    %vm1094 = vmor %vm1092, %vm1093
    %v1095 = vsel %vm1094, %v1086, %v1091
    %v1096 = vrsqrt.pop %v1043
    %v1097 = vmul.f32 %v1096, %v1043
    %v1098 = vmul.f32 %v1097, %v1096
    %v1099 = vmul.f32 0.5, %v1098
    %v1100 = vsub.f32 1.5, %v1099
    %v1101 = vmul.f32 %v1096, %v1100
    %vm1102 = vweird.f32 %v1043
    %vm1103 = vweird.f32 %v1096
    %vm1104 = vmor %vm1102, %vm1103
    %v1105 = vsel %vm1104, %v1096, %v1101
    %v1106 = vrsqrt.pop %v1044
    %v1107 = vmul.f32 %v1106, %v1044
    %v1108 = vmul.f32 %v1107, %v1106
    %v1109 = vmul.f32 0.5, %v1108
    %v1110 = vsub.f32 1.5, %v1109
    %v1111 = vmul.f32 %v1106, %v1110
    %vm1112 = vweird.f32 %v1044
    %vm1113 = vweird.f32 %v1106
    %vm1114 = vmor %vm1112, %vm1113
    %v1115 = vsel %vm1114, %v1106, %v1111
    %v1116 = vrsqrt.pop %v1045
    %v1117 = vmul.f32 %v1116, %v1045
    %v1118 = vmul.f32 %v1117, %v1116
    %v1119 = vmul.f32 0.5, %v1118
    %v1120 = vsub.f32 1.5, %v1119
    %v1121 = vmul.f32 %v1116, %v1120
    %vm1122 = vweird.f32 %v1045
    %vm1123 = vweird.f32 %v1116
    %vm1124 = vmor %vm1122, %vm1123
    %v1125 = vsel %vm1124, %v1116, %v1121
    %v1126 = vsub.f32 %v911, %v998
    %v1127 = vsub.f32 %v912, %v998
    %v1128 = vsub.f32 %v913, %v999
    %v1129 = vsub.f32 %v914, %v999
    %v1130 = vsub.f32 %v915, %v1000
    %v1131 = vsub.f32 %v916, %v1000
    %v1132 = vsub.f32 %v917, %v1001
    %v1133 = vsub.f32 %v918, %v1001
    %v1134 = vsub.f32 %v919, %v1002
    %v1135 = vsub.f32 %v920, %v1002
    %v1136 = vsub.f32 %v921, %v1003
    %v1137 = vsub.f32 %v922, %v1003
    %v1138 = vsub.f32 %v923, %v1004
    %v1139 = vsub.f32 %v924, %v1004
    %v1140 = vsub.f32 %v925, %v1005
    %v1141 = vsub.f32 %v926, %v1005
    %v1142 = vmul.f32 %v1126, %v1055
    %v1143 = vmul.f32 %v1127, %v1055
    %v1144 = vmul.f32 %v1128, %v1065
    %v1145 = vmul.f32 %v1129, %v1065
    %v1146 = vmul.f32 %v1130, %v1075
    %v1147 = vmul.f32 %v1131, %v1075
    %v1148 = vmul.f32 %v1132, %v1085
    %v1149 = vmul.f32 %v1133, %v1085
    %v1150 = vmul.f32 %v1134, %v1095
    %v1151 = vmul.f32 %v1135, %v1095
    %v1152 = vmul.f32 %v1136, %v1105
    %v1153 = vmul.f32 %v1137, %v1105
    %v1154 = vmul.f32 %v1138, %v1115
    %v1155 = vmul.f32 %v1139, %v1115
    %v1156 = vmul.f32 %v1140, %v1125
    %v1157 = vmul.f32 %v1141, %v1125
    %v1158 = vperm.slane %v110, 4
    %v1159 = vperm.slane %v111, 4
    %v1160 = vmul.f32 %v1142, %v1158
    %v1161 = vmul.f32 %v1143, %v1159
    %v1162 = vmul.f32 %v1144, %v1158
    %v1163 = vmul.f32 %v1145, %v1159
    %v1164 = vmul.f32 %v1146, %v1158
    %v1165 = vmul.f32 %v1147, %v1159
    %v1166 = vmul.f32 %v1148, %v1158
    %v1167 = vmul.f32 %v1149, %v1159
    %v1168 = vmul.f32 %v1150, %v1158
    %v1169 = vmul.f32 %v1151, %v1159
    %v1170 = vmul.f32 %v1152, %v1158
    %v1171 = vmul.f32 %v1153, %v1159
    %v1172 = vmul.f32 %v1154, %v1158
    %v1173 = vmul.f32 %v1155, %v1159
    %v1174 = vmul.f32 %v1156, %v1158
    %v1175 = vmul.f32 %v1157, %v1159
    %v1176 = vperm.slane %v110, 5
    %v1177 = vperm.slane %v111, 5
    %v1178 = vadd.f32 %v1160, %v1176
    %v1179 = vadd.f32 %v1161, %v1177
    %v1180 = vadd.f32 %v1162, %v1176
    %v1181 = vadd.f32 %v1163, %v1177
    %v1182 = vadd.f32 %v1164, %v1176
    %v1183 = vadd.f32 %v1165, %v1177
    %v1184 = vadd.f32 %v1166, %v1176
    %v1185 = vadd.f32 %v1167, %v1177
    %v1186 = vadd.f32 %v1168, %v1176
    %v1187 = vadd.f32 %v1169, %v1177
    %v1188 = vadd.f32 %v1170, %v1176
    %v1189 = vadd.f32 %v1171, %v1177
    %v1190 = vadd.f32 %v1172, %v1176
    %v1191 = vadd.f32 %v1173, %v1177
    %v1192 = vadd.f32 %v1174, %v1176
    %v1193 = vadd.f32 %v1175, %v1177
    %v1194 = vld [vmem:[#allocation7] sm:$0xff]
    %v1195 = vld [vmem:[#allocation7 + $0x8] sm:$0xff]
    %v1196 = vld [vmem:[#allocation7 + $0x10] sm:$0xff]
    %v1197 = vld [vmem:[#allocation7 + $0x18] sm:$0xff]
    %v1198 = vld [vmem:[#allocation7 + $0x20] sm:$0xff]
    %v1199 = vld [vmem:[#allocation7 + $0x28] sm:$0xff]
    %v1200 = vld [vmem:[#allocation7 + $0x30] sm:$0xff]
    %v1201 = vld [vmem:[#allocation7 + $0x38] sm:$0xff]
    %v1202 = vld [vmem:[#allocation7 + $0x40] sm:$0xff]
    %v1203 = vld [vmem:[#allocation7 + $0x48] sm:$0xff]
    %v1204 = vld [vmem:[#allocation7 + $0x50] sm:$0xff]
    %v1205 = vld [vmem:[#allocation7 + $0x58] sm:$0xff]
    %v1206 = vld [vmem:[#allocation7 + $0x60] sm:$0xff]
    %v1207 = vld [vmem:[#allocation7 + $0x68] sm:$0xff]
    %v1208 = vld [vmem:[#allocation7 + $0x70] sm:$0xff]
    %v1209 = vld [vmem:[#allocation7 + $0x78] sm:$0xff]
    %v1210 = vld [vmem:[#allocation7 + $0x80] sm:$0xff]
    %v1211 = vld [vmem:[#allocation7 + $0x88] sm:$0xff]
    %v1212 = vld [vmem:[#allocation7 + $0x90] sm:$0xff]
    %v1213 = vld [vmem:[#allocation7 + $0x98] sm:$0xff]
    %v1214 = vld [vmem:[#allocation7 + $0xa0] sm:$0xff]
    %v1215 = vld [vmem:[#allocation7 + $0xa8] sm:$0xff]
    %v1216 = vld [vmem:[#allocation7 + $0xb0] sm:$0xff]
    %v1217 = vld [vmem:[#allocation7 + $0xb8] sm:$0xff]
    %v1218 = vld [vmem:[#allocation7 + $0xc0] sm:$0xff]
    %v1219 = vld [vmem:[#allocation7 + $0xc8] sm:$0xff]
    %v1220 = vld [vmem:[#allocation7 + $0xd0] sm:$0xff]
    %v1221 = vld [vmem:[#allocation7 + $0xd8] sm:$0xff]
    %v1222 = vld [vmem:[#allocation7 + $0xe0] sm:$0xff]
    %v1223 = vld [vmem:[#allocation7 + $0xe8] sm:$0xff]
    %v1224 = vld [vmem:[#allocation7 + $0xf0] sm:$0xff]
    %v1225 = vld [vmem:[#allocation7 + $0xf8] sm:$0xff]
    %v1226 = vld [vmem:[#allocation7 + $0x100] sm:$0xff]
    %v1227 = vld [vmem:[#allocation7 + $0x108] sm:$0xff]
    %v1228 = vld [vmem:[#allocation7 + $0x110] sm:$0xff]
    %v1229 = vld [vmem:[#allocation7 + $0x118] sm:$0xff]
    %v1230 = vld [vmem:[#allocation7 + $0x120] sm:$0xff]
    %v1231 = vld [vmem:[#allocation7 + $0x128] sm:$0xff]
    %v1232 = vld [vmem:[#allocation7 + $0x130] sm:$0xff]
    %v1233 = vld [vmem:[#allocation7 + $0x138] sm:$0xff]
    %v1234 = vld [vmem:[#allocation7 + $0x140] sm:$0xff]
    %v1235 = vld [vmem:[#allocation7 + $0x148] sm:$0xff]
    %v1236 = vld [vmem:[#allocation7 + $0x150] sm:$0xff]
    %v1237 = vld [vmem:[#allocation7 + $0x158] sm:$0xff]
    %v1238 = vld [vmem:[#allocation7 + $0x160] sm:$0xff]
    %v1239 = vld [vmem:[#allocation7 + $0x168] sm:$0xff]
    %v1240 = vld [vmem:[#allocation7 + $0x170] sm:$0xff]
    %v1241 = vld [vmem:[#allocation7 + $0x178] sm:$0xff]
    %v1242 = vld [vmem:[#allocation7 + $0x180] sm:$0xff]
    %v1243 = vld [vmem:[#allocation7 + $0x188] sm:$0xff]
    %v1244 = vld [vmem:[#allocation7 + $0x190] sm:$0xff]
    %v1245 = vld [vmem:[#allocation7 + $0x198] sm:$0xff]
    %v1246 = vld [vmem:[#allocation7 + $0x1a0] sm:$0xff]
    %v1247 = vld [vmem:[#allocation7 + $0x1a8] sm:$0xff]
    %v1248 = vld [vmem:[#allocation7 + $0x1b0] sm:$0xff]
    %v1249 = vld [vmem:[#allocation7 + $0x1b8] sm:$0xff]
    %v1250 = vld [vmem:[#allocation7 + $0x1c0] sm:$0xff]
    %v1251 = vld [vmem:[#allocation7 + $0x1c8] sm:$0xff]
    %v1252 = vld [vmem:[#allocation7 + $0x1d0] sm:$0xff]
    %v1253 = vld [vmem:[#allocation7 + $0x1d8] sm:$0xff]
    %v1254 = vld [vmem:[#allocation7 + $0x1e0] sm:$0xff]
    %v1255 = vld [vmem:[#allocation7 + $0x1e8] sm:$0xff]
    %v1256 = vld [vmem:[#allocation7 + $0x1f0] sm:$0xff]
    %v1257 = vld [vmem:[#allocation7 + $0x1f8] sm:$0xff]
    %v1258 = vperm.slane %v110, 6
    %v1259 = vperm.slane %v111, 6
    %1260 = vmatpush.msra.mxu0 %v1224
    %1261 = vmatpush.msra.mxu0 %v1222
    %1262 = vmatpush.msra.mxu0 %v1220
    %1263 = vmatpush.msra.mxu0 %v1218
    %1264 = vmatpush.msra.mxu0 %v1216
    %1265 = vmatpush.msra.mxu0 %v1214
    %1266 = vmatpush.msra.mxu0 %v1212
    %1267 = vmatpush.msra.mxu0 %v1210
    %1268 = vmatpush.msra.mxu0 %v1208
    %1269 = vmatpush.msra.mxu0 %v1206
    %1270 = vmatpush.msra.mxu0 %v1204
    %1271 = vmatpush.msra.mxu0 %v1202
    %1272 = vmatpush.msra.mxu0 %v1200
    %1273 = vmatpush.msra.mxu0 %v1198
    %1274 = vmatpush.msra.mxu0 %v1196
    %1275 = vmatpush.msra.mxu0 %v1194
    %1276 = vmatmul.f32.gmra.mxu0 %v1178
    %v1277 = vpop.f32.mrf.mxu0
    %v1278 = vadd.f32 %v1258, %v1277
    %1279 = vmatmul.f32.gmra.mxu0 %v1180
    %v1280 = vpop.f32.mrf.mxu0
    %v1281 = vadd.f32 %v1258, %v1280
    %1282 = vmatmul.f32.gmra.mxu0 %v1182
    %v1283 = vpop.f32.mrf.mxu0
    %v1284 = vadd.f32 %v1258, %v1283
    %1285 = vmatmul.f32.gmra.mxu0 %v1184
    %v1286 = vpop.f32.mrf.mxu0
    %v1287 = vadd.f32 %v1258, %v1286
    %1288 = vmatmul.f32.gmra.mxu0 %v1186
    %v1289 = vpop.f32.mrf.mxu0
    %v1290 = vadd.f32 %v1258, %v1289
    %1291 = vmatmul.f32.gmra.mxu0 %v1188
    %v1292 = vpop.f32.mrf.mxu0
    %v1293 = vadd.f32 %v1258, %v1292
    %1294 = vmatmul.f32.gmra.mxu0 %v1190
    %v1295 = vpop.f32.mrf.mxu0
    %v1296 = vadd.f32 %v1258, %v1295
    %1297 = vmatmul.f32.gmra.mxu0 %v1192
    %v1298 = vpop.f32.mrf.mxu0
    %v1299 = vadd.f32 %v1258, %v1298
    %1300 = vdwg.mxu0
    %1301 = vmatpush.msra.mxu0 %v1256
    %1302 = vmatpush.msra.mxu0 %v1254
    %1303 = vmatpush.msra.mxu0 %v1252
    %1304 = vmatpush.msra.mxu0 %v1250
    %1305 = vmatpush.msra.mxu0 %v1248
    %1306 = vmatpush.msra.mxu0 %v1246
    %1307 = vmatpush.msra.mxu0 %v1244
    %1308 = vmatpush.msra.mxu0 %v1242
    %1309 = vmatpush.msra.mxu0 %v1240
    %1310 = vmatpush.msra.mxu0 %v1238
    %1311 = vmatpush.msra.mxu0 %v1236
    %1312 = vmatpush.msra.mxu0 %v1234
    %1313 = vmatpush.msra.mxu0 %v1232
    %1314 = vmatpush.msra.mxu0 %v1230
    %1315 = vmatpush.msra.mxu0 %v1228
    %1316 = vmatpush.msra.mxu0 %v1226
    %1317 = vmatmul.f32.gmra.mxu0 %v1179
    %v1318 = vpop.f32.mrf.mxu0
    %v1319 = vadd.f32 %v1278, %v1318
    %1320 = vmatmul.f32.gmra.mxu0 %v1181
    %v1321 = vpop.f32.mrf.mxu0
    %v1322 = vadd.f32 %v1281, %v1321
    %1323 = vmatmul.f32.gmra.mxu0 %v1183
    %v1324 = vpop.f32.mrf.mxu0
    %v1325 = vadd.f32 %v1284, %v1324
    %1326 = vmatmul.f32.gmra.mxu0 %v1185
    %v1327 = vpop.f32.mrf.mxu0
    %v1328 = vadd.f32 %v1287, %v1327
    %1329 = vmatmul.f32.gmra.mxu0 %v1187
    %v1330 = vpop.f32.mrf.mxu0
    %v1331 = vadd.f32 %v1290, %v1330
    %1332 = vmatmul.f32.gmra.mxu0 %v1189
    %v1333 = vpop.f32.mrf.mxu0
    %v1334 = vadd.f32 %v1293, %v1333
    %1335 = vmatmul.f32.gmra.mxu0 %v1191
    %v1336 = vpop.f32.mrf.mxu0
    %v1337 = vadd.f32 %v1296, %v1336
    %1338 = vmatmul.f32.gmra.mxu0 %v1193
    %v1339 = vpop.f32.mrf.mxu0
    %v1340 = vadd.f32 %v1299, %v1339
    %1341 = vdwg.mxu0
    %1342 = vmatpush.msra.mxu0 %v1225
    %1343 = vmatpush.msra.mxu0 %v1223
    %1344 = vmatpush.msra.mxu0 %v1221
    %1345 = vmatpush.msra.mxu0 %v1219
    %1346 = vmatpush.msra.mxu0 %v1217
    %1347 = vmatpush.msra.mxu0 %v1215
    %1348 = vmatpush.msra.mxu0 %v1213
    %1349 = vmatpush.msra.mxu0 %v1211
    %1350 = vmatpush.msra.mxu0 %v1209
    %1351 = vmatpush.msra.mxu0 %v1207
    %1352 = vmatpush.msra.mxu0 %v1205
    %1353 = vmatpush.msra.mxu0 %v1203
    %1354 = vmatpush.msra.mxu0 %v1201
    %1355 = vmatpush.msra.mxu0 %v1199
    %1356 = vmatpush.msra.mxu0 %v1197
    %1357 = vmatpush.msra.mxu0 %v1195
    %1358 = vmatmul.f32.gmra.mxu0 %v1178
    %v1359 = vpop.f32.mrf.mxu0
    %v1360 = vadd.f32 %v1259, %v1359
    %1361 = vmatmul.f32.gmra.mxu0 %v1180
    %v1362 = vpop.f32.mrf.mxu0
    %v1363 = vadd.f32 %v1259, %v1362
    %1364 = vmatmul.f32.gmra.mxu0 %v1182
    %v1365 = vpop.f32.mrf.mxu0
    %v1366 = vadd.f32 %v1259, %v1365
    %1367 = vmatmul.f32.gmra.mxu0 %v1184
    %v1368 = vpop.f32.mrf.mxu0
    %v1369 = vadd.f32 %v1259, %v1368
    %1370 = vmatmul.f32.gmra.mxu0 %v1186
    %v1371 = vpop.f32.mrf.mxu0
    %v1372 = vadd.f32 %v1259, %v1371
    %1373 = vmatmul.f32.gmra.mxu0 %v1188
    %v1374 = vpop.f32.mrf.mxu0
    %v1375 = vadd.f32 %v1259, %v1374
    %1376 = vmatmul.f32.gmra.mxu0 %v1190
    %v1377 = vpop.f32.mrf.mxu0
    %v1378 = vadd.f32 %v1259, %v1377
    %1379 = vmatmul.f32.gmra.mxu0 %v1192
    %v1380 = vpop.f32.mrf.mxu0
    %v1381 = vadd.f32 %v1259, %v1380
    %1382 = vdwg.mxu0
    %1383 = vmatpush.msra.mxu0 %v1257
    %1384 = vmatpush.msra.mxu0 %v1255
    %1385 = vmatpush.msra.mxu0 %v1253
    %1386 = vmatpush.msra.mxu0 %v1251
    %1387 = vmatpush.msra.mxu0 %v1249
    %1388 = vmatpush.msra.mxu0 %v1247
    %1389 = vmatpush.msra.mxu0 %v1245
    %1390 = vmatpush.msra.mxu0 %v1243
    %1391 = vmatpush.msra.mxu0 %v1241
    %1392 = vmatpush.msra.mxu0 %v1239
    %1393 = vmatpush.msra.mxu0 %v1237
    %1394 = vmatpush.msra.mxu0 %v1235
    %1395 = vmatpush.msra.mxu0 %v1233
    %1396 = vmatpush.msra.mxu0 %v1231
    %1397 = vmatpush.msra.mxu0 %v1229
    %1398 = vmatpush.msra.mxu0 %v1227
    %1399 = vmatmul.f32.gmra.mxu0 %v1179
    %v1400 = vpop.f32.mrf.mxu0
    %v1401 = vadd.f32 %v1360, %v1400
    %1402 = vmatmul.f32.gmra.mxu0 %v1181
    %v1403 = vpop.f32.mrf.mxu0
    %v1404 = vadd.f32 %v1363, %v1403
    %1405 = vmatmul.f32.gmra.mxu0 %v1183
    %v1406 = vpop.f32.mrf.mxu0
    %v1407 = vadd.f32 %v1366, %v1406
    %1408 = vmatmul.f32.gmra.mxu0 %v1185
    %v1409 = vpop.f32.mrf.mxu0
    %v1410 = vadd.f32 %v1369, %v1409
    %1411 = vmatmul.f32.gmra.mxu0 %v1187
    %v1412 = vpop.f32.mrf.mxu0
    %v1413 = vadd.f32 %v1372, %v1412
    %1414 = vmatmul.f32.gmra.mxu0 %v1189
    %v1415 = vpop.f32.mrf.mxu0
    %v1416 = vadd.f32 %v1375, %v1415
    %1417 = vmatmul.f32.gmra.mxu0 %v1191
    %v1418 = vpop.f32.mrf.mxu0
    %v1419 = vadd.f32 %v1378, %v1418
    %1420 = vmatmul.f32.gmra.mxu0 %v1193
    %v1421 = vpop.f32.mrf.mxu0
    %v1422 = vadd.f32 %v1381, %v1421
    %1423 = vdwg.mxu0
    %v1424 = vadd.f32 %v1319, %v1178
    %v1425 = vadd.f32 %v1401, %v1179
    %v1426 = vadd.f32 %v1322, %v1180
    %v1427 = vadd.f32 %v1404, %v1181
    %v1428 = vadd.f32 %v1325, %v1182
    %v1429 = vadd.f32 %v1407, %v1183
    %v1430 = vadd.f32 %v1328, %v1184
    %v1431 = vadd.f32 %v1410, %v1185
    %v1432 = vadd.f32 %v1331, %v1186
    %v1433 = vadd.f32 %v1413, %v1187
    %v1434 = vadd.f32 %v1334, %v1188
    %v1435 = vadd.f32 %v1416, %v1189
    %v1436 = vadd.f32 %v1337, %v1190
    %v1437 = vadd.f32 %v1419, %v1191
    %v1438 = vadd.f32 %v1340, %v1192
    %v1439 = vadd.f32 %v1422, %v1193
    %v1440 = vmax.f32 %v1424, 0.0
    %v1441 = vmax.f32 %v1425, 0.0
    %v1442 = vmax.f32 %v1426, 0.0
    %v1443 = vmax.f32 %v1427, 0.0
    %v1444 = vmax.f32 %v1428, 0.0
    %v1445 = vmax.f32 %v1429, 0.0
    %v1446 = vmax.f32 %v1430, 0.0
    %v1447 = vmax.f32 %v1431, 0.0
    %v1448 = vmax.f32 %v1432, 0.0
    %v1449 = vmax.f32 %v1433, 0.0
    %v1450 = vmax.f32 %v1434, 0.0
    %v1451 = vmax.f32 %v1435, 0.0
    %v1452 = vmax.f32 %v1436, 0.0
    %v1453 = vmax.f32 %v1437, 0.0
    %v1454 = vmax.f32 %v1438, 0.0
    %v1455 = vmax.f32 %v1439, 0.0
    %v1456 = vld [vmem:[%s5] sm:$0xff]
    %v1457 = vld [vmem:[%s5 + $0x8] sm:$0xff]
    %v1458 = vld [vmem:[%s5 + $0x10] sm:$0xff]
    %v1459 = vld [vmem:[%s5 + $0x18] sm:$0xff]
    %v1460 = vld [vmem:[%s5 + $0x20] sm:$0xff]
    %v1461 = vld [vmem:[%s5 + $0x28] sm:$0xff]
    %v1462 = vld [vmem:[%s5 + $0x30] sm:$0xff]
    %v1463 = vld [vmem:[%s5 + $0x38] sm:$0xff]
    %v1464 = vld [vmem:[%s5 + $0x40] sm:$0xff]
    %v1465 = vld [vmem:[%s5 + $0x48] sm:$0xff]
    %v1466 = vld [vmem:[%s5 + $0x50] sm:$0xff]
    %v1467 = vld [vmem:[%s5 + $0x58] sm:$0xff]
    %v1468 = vld [vmem:[%s5 + $0x60] sm:$0xff]
    %v1469 = vld [vmem:[%s5 + $0x68] sm:$0xff]
    %v1470 = vld [vmem:[%s5 + $0x70] sm:$0xff]
    %v1471 = vld [vmem:[%s5 + $0x78] sm:$0xff]
    %v1472 = vld [vmem:[%s5 + $0x80] sm:$0xff]
    %v1473 = vld [vmem:[%s5 + $0x88] sm:$0xff]
    %v1474 = vld [vmem:[%s5 + $0x90] sm:$0xff]
    %v1475 = vld [vmem:[%s5 + $0x98] sm:$0xff]
    %v1476 = vld [vmem:[%s5 + $0xa0] sm:$0xff]
    %v1477 = vld [vmem:[%s5 + $0xa8] sm:$0xff]
    %v1478 = vld [vmem:[%s5 + $0xb0] sm:$0xff]
    %v1479 = vld [vmem:[%s5 + $0xb8] sm:$0xff]
    %v1480 = vld [vmem:[%s5 + $0xc0] sm:$0xff]
    %v1481 = vld [vmem:[%s5 + $0xc8] sm:$0xff]
    %v1482 = vld [vmem:[%s5 + $0xd0] sm:$0xff]
    %v1483 = vld [vmem:[%s5 + $0xd8] sm:$0xff]
    %v1484 = vld [vmem:[%s5 + $0xe0] sm:$0xff]
    %v1485 = vld [vmem:[%s5 + $0xe8] sm:$0xff]
    %v1486 = vld [vmem:[%s5 + $0xf0] sm:$0xff]
    %v1487 = vld [vmem:[%s5 + $0xf8] sm:$0xff]
    %v1488 = vperm.slane %v110, 7
    %1489 = vmatpush.msra.mxu0 %v1471
    %1490 = vmatpush.msra.mxu0 %v1470
    %1491 = vmatpush.msra.mxu0 %v1469
    %1492 = vmatpush.msra.mxu0 %v1468
    %1493 = vmatpush.msra.mxu0 %v1467
    %1494 = vmatpush.msra.mxu0 %v1466
    %1495 = vmatpush.msra.mxu0 %v1465
    %1496 = vmatpush.msra.mxu0 %v1464
    %1497 = vmatpush.msra.mxu0 %v1463
    %1498 = vmatpush.msra.mxu0 %v1462
    %1499 = vmatpush.msra.mxu0 %v1461
    %1500 = vmatpush.msra.mxu0 %v1460
    %1501 = vmatpush.msra.mxu0 %v1459
    %1502 = vmatpush.msra.mxu0 %v1458
    %1503 = vmatpush.msra.mxu0 %v1457
    %1504 = vmatpush.msra.mxu0 %v1456
    %1505 = vmatmul.f32.gmra.mxu0 %v1440
    %v1506 = vpop.f32.mrf.mxu0
    %v1507 = vadd.f32 %v1488, %v1506
    %1508 = vmatmul.f32.gmra.mxu0 %v1442
    %v1509 = vpop.f32.mrf.mxu0
    %v1510 = vadd.f32 %v1488, %v1509
    %1511 = vmatmul.f32.gmra.mxu0 %v1444
    %v1512 = vpop.f32.mrf.mxu0
    %v1513 = vadd.f32 %v1488, %v1512
    %1514 = vmatmul.f32.gmra.mxu0 %v1446
    %v1515 = vpop.f32.mrf.mxu0
    %v1516 = vadd.f32 %v1488, %v1515
    %1517 = vmatmul.f32.gmra.mxu0 %v1448
    %v1518 = vpop.f32.mrf.mxu0
    %v1519 = vadd.f32 %v1488, %v1518
    %1520 = vmatmul.f32.gmra.mxu0 %v1450
    %v1521 = vpop.f32.mrf.mxu0
    %v1522 = vadd.f32 %v1488, %v1521
    %1523 = vmatmul.f32.gmra.mxu0 %v1452
    %v1524 = vpop.f32.mrf.mxu0
    %v1525 = vadd.f32 %v1488, %v1524
    %1526 = vmatmul.f32.gmra.mxu0 %v1454
    %v1527 = vpop.f32.mrf.mxu0
    %v1528 = vadd.f32 %v1488, %v1527
    %1529 = vdwg.mxu0
    %1530 = vmatpush.msra.mxu0 %v1487
    %1531 = vmatpush.msra.mxu0 %v1486
    %1532 = vmatpush.msra.mxu0 %v1485
    %1533 = vmatpush.msra.mxu0 %v1484
    %1534 = vmatpush.msra.mxu0 %v1483
    %1535 = vmatpush.msra.mxu0 %v1482
    %1536 = vmatpush.msra.mxu0 %v1481
    %1537 = vmatpush.msra.mxu0 %v1480
    %1538 = vmatpush.msra.mxu0 %v1479
    %1539 = vmatpush.msra.mxu0 %v1478
    %1540 = vmatpush.msra.mxu0 %v1477
    %1541 = vmatpush.msra.mxu0 %v1476
    %1542 = vmatpush.msra.mxu0 %v1475
    %1543 = vmatpush.msra.mxu0 %v1474
    %1544 = vmatpush.msra.mxu0 %v1473
    %1545 = vmatpush.msra.mxu0 %v1472
    %1546 = vmatmul.f32.gmra.mxu0 %v1441
    %v1547 = vpop.f32.mrf.mxu0
    %v1548 = vadd.f32 %v1507, %v1547
    %1549 = vmatmul.f32.gmra.mxu0 %v1443
    %v1550 = vpop.f32.mrf.mxu0
    %v1551 = vadd.f32 %v1510, %v1550
    %1552 = vmatmul.f32.gmra.mxu0 %v1445
    %v1553 = vpop.f32.mrf.mxu0
    %v1554 = vadd.f32 %v1513, %v1553
    %1555 = vmatmul.f32.gmra.mxu0 %v1447
    %v1556 = vpop.f32.mrf.mxu0
    %v1557 = vadd.f32 %v1516, %v1556
    %1558 = vmatmul.f32.gmra.mxu0 %v1449
    %v1559 = vpop.f32.mrf.mxu0
    %v1560 = vadd.f32 %v1519, %v1559
    %1561 = vmatmul.f32.gmra.mxu0 %v1451
    %v1562 = vpop.f32.mrf.mxu0
    %v1563 = vadd.f32 %v1522, %v1562
    %1564 = vmatmul.f32.gmra.mxu0 %v1453
    %v1565 = vpop.f32.mrf.mxu0
    %v1566 = vadd.f32 %v1525, %v1565
    %1567 = vmatmul.f32.gmra.mxu0 %v1455
    %v1568 = vpop.f32.mrf.mxu0
    %v1569 = vadd.f32 %v1528, %v1568
    %1570 = vdwg.mxu0
    %vm1571 = vcmask 15360
    %1572 = vst.msk [vmem:[%s7] sm:$0xff] %vm1571, %v1548
    %1573 = vst.msk [vmem:[%s7 + $0x8] sm:$0xff] %vm1571, %v1551
    %1574 = vst.msk [vmem:[%s7 + $0x10] sm:$0xff] %vm1571, %v1554
    %1575 = vst.msk [vmem:[%s7 + $0x18] sm:$0xff] %vm1571, %v1557
    %1576 = vst.msk [vmem:[%s7 + $0x20] sm:$0xff] %vm1571, %v1560
    %1577 = vst.msk [vmem:[%s7 + $0x28] sm:$0xff] %vm1571, %v1563
    %1578 = vst.msk [vmem:[%s7 + $0x30] sm:$0xff] %vm1571, %v1566
    %1579 = vst.msk [vmem:[%s7 + $0x38] sm:$0xff] %vm1571, %v1569
    // Predicated region
    $region50: #{tpu_custom_call.1} parent=1 // pred_check
      _
    $region51: #{tpu_custom_call.1} parent=1 // pred_check_branch
      %1581 = sbr.rel (0) target = $region53
    $region52: #{tpu_custom_call.1} parent=1 // pred_region
      _
    $region53: #{tpu_custom_call.1} parent=1 // pred_fallthru
      _
    // Predicated region
    $region54: #{tpu_custom_call.1} parent=1 // pred_check
      _
    $region55: #{tpu_custom_call.1} parent=1 // pred_check_branch
      %1583 = sbr.rel (0) target = $region57
    $region56: #{tpu_custom_call.1} parent=1 // pred_region
      _
    $region57: #{tpu_custom_call.1} parent=1 // pred_fallthru
      _
    %1584 = vsyncpa [#allocation3], 1
    %1585 = vsyncpa [#allocation5], 1
    %1586 = vsyncpa [#allocation8], 1

</llo_original>
